<compile_context>
chip_gen: v7x
topology: tpu7x:2x2x1
jax: 0.10.0
libtpu: 0.0.40
codegen_flags: <defaults>
</compile_context>

<pallas_src>
import math
from functools import partial

import jax
import jax.numpy as jnp
from jax import lax
from jax.experimental import pallas as pl
from jax.experimental.pallas import tpu as pltpu

HID = 128          # GraphConv hidden width used throughout the torch module
RATIO = 0.8        # TopKPooling ratio
NEG = -1e30        # "minus infinity" for masking (all kept values are > -1e30)


def _graph_forward_kernel(
    n, ks,
    a_ref, x_ref,
    w1_ref, b1_ref, p1_ref,
    w2_ref, b2_ref, p2_ref,
    w3_ref, b3_ref, p3_ref,
    l1w_ref, l1b_ref, l2w_ref, l2b_ref, l3w_ref, l3b_ref,
    o_ref,
):
    # Per-graph blocks (grid axis 0 = graph id); leading block dim is squeezed.
    a_bf = a_ref[...]                      # (n, n)   bf16 0/1 adjacency (exact)
    x_cur = x_ref[...]                     # (n, HID) f32, features zero-padded

    # Loop-invariant tie-break mask (col idx < row idx -> lower index wins),
    # derived in-kernel from iota: no (N,N) mask operands, no same-graph mask.
    row_i = lax.broadcasted_iota(jnp.int32, (n, n), 0)
    col_i = lax.broadcasted_iota(jnp.int32, (n, n), 1)
    prior = (col_i < row_i).astype(jnp.float32)

    active = jnp.ones((n, 1), jnp.float32)        # nodes surviving previous pools
    gmax_sum = jnp.zeros((1, HID), jnp.float32)   # sum over stages of global max
    gmean_sum = jnp.zeros((1, HID), jnp.float32)  # sum over stages of global mean

    stage_params = ((w1_ref, b1_ref, p1_ref),
                    (w2_ref, b2_ref, p2_ref),
                    (w3_ref, b3_ref, p3_ref))

    for stage in range(3):
        w_ref, b_ref, p_ref = stage_params[stage]
        k = ks[stage]

        # --- GraphConv + ReLU: single fused K=2*HID bf16 MXU contraction -----
        x_bf = x_cur.astype(jnp.bfloat16)
        agg = jnp.dot(a_bf, x_bf, preferred_element_type=jnp.float32)      # (n, HID)
        cat = jnp.concatenate([agg.astype(jnp.bfloat16), x_bf], axis=-1)   # (n, 2*HID) bf16
        h = jnp.dot(cat, w_ref[...], preferred_element_type=jnp.float32) + b_ref[...]
        h = jnp.maximum(h, 0.0)

        # --- TopKPooling score: tanh(h . w / ||w||) (f32 lane reduction) -----
        s = jnp.tanh(jnp.sum(h * p_ref[...], axis=-1, keepdims=True))      # (n, 1)
        s_act = s + (1.0 - active) * NEG          # pooled-away nodes -> -1e30

        # --- in-kernel top-k via per-graph rank (no gather, no lax.top_k) ----
        # With the per-graph grid this transpose is a single padded tile
        # (n <= 128), not the old N x N relayout.
        s_t = jnp.broadcast_to(s_act, (n, n)).T                            # [i,j] = s[j]
        beats = (s_t > s_act).astype(jnp.float32) \
            + (s_t == s_act).astype(jnp.float32) * prior
        rank = jnp.sum(beats, axis=-1, keepdims=True)                      # (n, 1)
        sel = (rank < float(k)).astype(jnp.float32) * active               # (n, 1) {0,1}

        # x <- x[perm] * score[perm]  (masked form: dropped rows become 0)
        x_cur = h * s * sel
        active = sel

        # --- global max / mean pool over the k kept nodes of this graph ------
        gmax_sum = gmax_sum + jnp.max(x_cur + (1.0 - sel) * NEG, axis=0, keepdims=True)
        gmean_sum = gmean_sum + jnp.sum(x_cur, axis=0, keepdims=True) * (1.0 / k)

    # --- MLP head: lin1 -> ReLU -> dropout(eval: id) -> lin2 -> ReLU -> lin3 -
    # TODO(synk): F.dropout(p=0.5) is identity in eval mode; training-mode dropout not implemented.
    z = jnp.concatenate([gmax_sum, gmean_sum], axis=-1)                    # (1, 2*HID)
    h1 = jnp.maximum(jnp.dot(z.astype(jnp.bfloat16), l1w_ref[...],
                             preferred_element_type=jnp.float32) + l1b_ref[...], 0.0)
    h2 = jnp.maximum(jnp.dot(h1.astype(jnp.bfloat16), l2w_ref[...],
                             preferred_element_type=jnp.float32) + l2b_ref[...], 0.0)
    logits = jnp.dot(h2.astype(jnp.bfloat16), l3w_ref[...],
                     preferred_element_type=jnp.float32) + l3b_ref[...]    # (1, C)
    m = jnp.max(logits, axis=-1, keepdims=True)
    lse = m + jnp.log(jnp.sum(jnp.exp(logits - m), axis=-1, keepdims=True))
    o_ref[...] = logits - lse


def topk_pool_net_forward(params, x, a, n_per_graph):
    """Forward pass of topk_pool_Net as a single graph-gridded Pallas call."""
    n = n_per_graph
    num_graphs = x.shape[0] // n
    num_classes = params["lin3"][0].shape[1]

    # Static per-stage k = ceil(ratio * nodes_per_graph) (equal-sized graphs).
    ks, cur = [], n
    for _ in range(3):
        cur = math.ceil(RATIO * cur)
        ks.append(cur)
    ks = tuple(ks)

    # Lane-dense node features, zero-padded to HID, reshaped per graph.
    f = x.shape[1]
    x_pad = x.astype(jnp.float32)
    if f < HID:
        x_pad = jnp.pad(x_pad, ((0, 0), (0, HID - f)))
    x_blk = x_pad.reshape(num_graphs, n, HID)

    # Diagonal (per-graph) adjacency blocks only, shipped as bf16 (0/1 exact).
    a4 = a.reshape(num_graphs, n, num_graphs, n)
    a_blk = a4[jnp.arange(num_graphs), :, jnp.arange(num_graphs), :].astype(jnp.bfloat16)

    def p_row(p):  # normalized TopKPooling projection, laid out as a (1, HID) row
        nrm = jnp.maximum(jnp.linalg.norm(p), 1e-12)
        return (p / nrm).reshape(1, HID).astype(jnp.float32)

    operands = (
        a_blk, x_blk,
        params["conv1"][0], params["conv1"][1], p_row(params["pool1"]),
        params["conv2"][0], params["conv2"][1], p_row(params["pool2"]),
        params["conv3"][0], params["conv3"][1], p_row(params["pool3"]),
        params["lin1"][0].astype(jnp.bfloat16), params["lin1"][1],
        params["lin2"][0].astype(jnp.bfloat16), params["lin2"][1],
        params["lin3"][0].astype(jnp.bfloat16), params["lin3"][1],
    )

    def const_spec(arr):  # small weight, same full-size block every grid step
        nd = arr.ndim
        return pl.BlockSpec(arr.shape, lambda g, nd=nd: (0,) * nd)

    in_specs = [
        pl.BlockSpec((None, n, n), lambda g: (g, 0, 0)),     # graph g's A block
        pl.BlockSpec((None, n, HID), lambda g: (g, 0, 0)),   # graph g's features
    ] + [const_spec(op) for op in operands[2:]]

    out_spec = pl.BlockSpec((None, 1, num_classes), lambda g: (g, 0, 0))

    kernel = partial(_graph_forward_kernel, n, ks)
    out = pl.pallas_call(
        kernel,
        out_shape=jax.ShapeDtypeStruct((num_graphs, 1, num_classes), jnp.float32),
        grid_spec=pltpu.PrefetchScalarGridSpec(
            num_scalar_prefetch=0,
            grid=(num_graphs,),
            in_specs=in_specs,
            out_specs=out_spec,
        ),
        compiler_params=pltpu.CompilerParams(
            dimension_semantics=("parallel",),
            vmem_limit_bytes=16 * 1024 * 1024,   # resident operands are < 1 MiB
        ),
    )(*operands)
    return out[:, 0, :]


# --------------------- deterministic parameter init ---------------------
def _linear(key, fan_in, fan_out):
    kw, kb = jax.random.split(key)
    w = jax.random.normal(kw, (fan_in, fan_out), jnp.float32) / math.sqrt(fan_in)
    b = jax.random.normal(kb, (1, fan_out), jnp.float32) * 0.01
    return w, b


def _graph_conv_params(key, fan_in, fan_out):
    """Fused GraphConv weight: concat([W_rel, W_root], axis=0) in bf16, rows
    zero-padded to HID so the kernel runs a single K=2*HID contraction.
    (PyG GraphConv: lin_rel has a bias, lin_root does not.)"""
    k1, k2 = jax.random.split(key)
    w_rel, b_rel = _linear(k1, fan_in, fan_out)
    w_root, _ = _linear(k2, fan_in, fan_out)
    if fan_in < HID:
        pad = ((0, HID - fan_in), (0, 0))
        w_rel = jnp.pad(w_rel, pad)
        w_root = jnp.pad(w_root, pad)
    w_cat = jnp.concatenate([w_rel, w_root], axis=0).astype(jnp.bfloat16)  # (2*HID, HID)
    return w_cat, b_rel


def init_params(key, num_features, num_classes, width1, width2):
    ks = jax.random.split(key, 9)
    return {
        "conv1": _graph_conv_params(ks[0], num_features, HID),
        "pool1": jax.random.normal(ks[1], (HID,), jnp.float32),
        "conv2": _graph_conv_params(ks[2], HID, HID),
        "pool2": jax.random.normal(ks[3], (HID,), jnp.float32),
        "conv3": _graph_conv_params(ks[4], HID, HID),
        "pool3": jax.random.normal(ks[5], (HID,), jnp.float32),
        "lin1": _linear(ks[6], 2 * HID, width1),
        "lin2": _linear(ks[7], width1, width2),
        "lin3": _linear(ks[8], width2, num_classes),
    }


if __name__ == "__main__":
    num_graphs = 2          # data.batch has 2 graphs
    n_per_graph = 16        # nodes per graph (equal-sized graphs -> static top-k)
    num_features = 16       # datasetroot.num_features
    num_classes = 8         # datasetroot.num_classes
    width1, width2 = 64, 32 # width[1], width[2]

    key = jax.random.PRNGKey(0)
    k_x, k_a, k_p = jax.random.split(key, 3)

    # node features (data.x)
    x = jax.random.normal(k_x, (num_graphs * n_per_graph, num_features), jnp.float32)

    # dense block-diagonal adjacency standing in for data.edge_index
    blocks = (jax.random.uniform(k_a, (num_graphs, n_per_graph, n_per_graph)) < 0.3)
    blocks = blocks.astype(jnp.float32)
    a = jax.scipy.linalg.block_diag(*[blocks[i] for i in range(num_graphs)])

    params = init_params(k_p, num_features, num_classes, width1, width2)

    fwd = jax.jit(topk_pool_net_forward, static_argnums=(3,))
    out = fwd(params, x, a, n_per_graph)
    out = jax.block_until_ready(out)
    assert out.shape == (num_graphs, num_classes)
    assert bool(jnp.all(jnp.isfinite(out)))
    print("KERNEL_OK")
</pallas_src>

<mosaic_0001>
module attributes {stable_mosaic.version = 11 : i64} {
  func.func @_graph_forward_kernel(%arg0: i32, %arg1: memref<1x16x16xbf16, #tpu.memory_space<vmem>>, %arg2: memref<1x16x128xf32, #tpu.memory_space<vmem>>, %arg3: memref<256x128xbf16, #tpu.memory_space<vmem>>, %arg4: memref<1x128xf32, #tpu.memory_space<vmem>>, %arg5: memref<1x128xf32, #tpu.memory_space<vmem>>, %arg6: memref<256x128xbf16, #tpu.memory_space<vmem>>, %arg7: memref<1x128xf32, #tpu.memory_space<vmem>>, %arg8: memref<1x128xf32, #tpu.memory_space<vmem>>, %arg9: memref<256x128xbf16, #tpu.memory_space<vmem>>, %arg10: memref<1x128xf32, #tpu.memory_space<vmem>>, %arg11: memref<1x128xf32, #tpu.memory_space<vmem>>, %arg12: memref<256x64xbf16, #tpu.memory_space<vmem>>, %arg13: memref<1x64xf32, #tpu.memory_space<vmem>>, %arg14: memref<64x32xbf16, #tpu.memory_space<vmem>>, %arg15: memref<1x32xf32, #tpu.memory_space<vmem>>, %arg16: memref<32x8xbf16, #tpu.memory_space<vmem>>, %arg17: memref<1x8xf32, #tpu.memory_space<vmem>>, %arg18: memref<1x1x8xf32, #tpu.memory_space<vmem>>) attributes {dimension_semantics = [#tpu.dimension_semantics<parallel>], iteration_bounds = array<i64: 2>, scalar_prefetch = 0 : i64, scratch_operands = 0 : i64, tpu.core_type = #tpu.core_type<tc>, window_params = [{transform_indices = @transform_0, window_bounds = array<i64: 1, 16, 16>}, {transform_indices = @transform_1, window_bounds = array<i64: 1, 16, 128>}, {pipeline_mode = #tpu.pipeline_mode<synchronous>, transform_indices = @transform_2, window_bounds = array<i64: 256, 128>}, {pipeline_mode = #tpu.pipeline_mode<synchronous>, transform_indices = @transform_3, window_bounds = array<i64: 1, 128>}, {pipeline_mode = #tpu.pipeline_mode<synchronous>, transform_indices = @transform_4, window_bounds = array<i64: 1, 128>}, {pipeline_mode = #tpu.pipeline_mode<synchronous>, transform_indices = @transform_5, window_bounds = array<i64: 256, 128>}, {pipeline_mode = #tpu.pipeline_mode<synchronous>, transform_indices = @transform_6, window_bounds = array<i64: 1, 128>}, {pipeline_mode = #tpu.pipeline_mode<synchronous>, transform_indices = @transform_7, window_bounds = array<i64: 1, 128>}, {pipeline_mode = #tpu.pipeline_mode<synchronous>, transform_indices = @transform_8, window_bounds = array<i64: 256, 128>}, {pipeline_mode = #tpu.pipeline_mode<synchronous>, transform_indices = @transform_9, window_bounds = array<i64: 1, 128>}, {pipeline_mode = #tpu.pipeline_mode<synchronous>, transform_indices = @transform_10, window_bounds = array<i64: 1, 128>}, {pipeline_mode = #tpu.pipeline_mode<synchronous>, transform_indices = @transform_11, window_bounds = array<i64: 256, 64>}, {pipeline_mode = #tpu.pipeline_mode<synchronous>, transform_indices = @transform_12, window_bounds = array<i64: 1, 64>}, {pipeline_mode = #tpu.pipeline_mode<synchronous>, transform_indices = @transform_13, window_bounds = array<i64: 64, 32>}, {pipeline_mode = #tpu.pipeline_mode<synchronous>, transform_indices = @transform_14, window_bounds = array<i64: 1, 32>}, {pipeline_mode = #tpu.pipeline_mode<synchronous>, transform_indices = @transform_15, window_bounds = array<i64: 32, 8>}, {pipeline_mode = #tpu.pipeline_mode<synchronous>, transform_indices = @transform_16, window_bounds = array<i64: 1, 8>}, {transform_indices = @transform_17, window_bounds = array<i64: 1, 1, 8>}]} {
    %c0 = arith.constant 0 : index
    %c0_0 = arith.constant 0 : index
    %c0_1 = arith.constant 0 : index
    %0 = vector.load %arg1[%c0, %c0_0, %c0_1] : memref<1x16x16xbf16, #tpu.memory_space<vmem>>, vector<1x16x16xbf16>
    %1 = vector.shape_cast %0 : vector<1x16x16xbf16> to vector<16x16xbf16>
    %c0_2 = arith.constant 0 : index
    %c0_3 = arith.constant 0 : index
    %c0_4 = arith.constant 0 : index
    %2 = vector.load %arg2[%c0_2, %c0_3, %c0_4] : memref<1x16x128xf32, #tpu.memory_space<vmem>>, vector<1x16x128xf32>
    %3 = vector.shape_cast %2 : vector<1x16x128xf32> to vector<16x128xf32>
    %4 = tpu.iota {dimensions = array<i32: 0>} : vector<16x16xi32>
    %5 = tpu.iota {dimensions = array<i32: 1>} : vector<16x16xi32>
    %6 = arith.cmpi slt, %5, %4 : vector<16x16xi32>
    %7 = arith.extui %6 : vector<16x16xi1> to vector<16x16xi32>
    %8 = arith.sitofp %7 : vector<16x16xi32> to vector<16x16xf32>
    %cst = arith.constant 1.000000e+00 : f32
    %9 = vector.broadcast %cst : f32 to vector<16x1xf32>
    %cst_5 = arith.constant 0.000000e+00 : f32
    %10 = vector.broadcast %cst_5 : f32 to vector<1x128xf32>
    %cst_6 = arith.constant 0.000000e+00 : f32
    %11 = vector.broadcast %cst_6 : f32 to vector<1x128xf32>
    %12 = arith.truncf %3 : vector<16x128xf32> to vector<16x128xbf16>
    %cst_7 = arith.constant dense<0.000000e+00> : vector<16x128xf32>
    %13 = tpu.matmul %1, %12, %cst_7 {dimension_numbers = #tpu.dot_dimension_numbers<[1], [0], [0], [1], [0, 0, 1, 1], [], []>} : vector<16x16xbf16>, vector<16x128xbf16>, vector<16x128xf32> -> vector<16x128xf32>
    %14 = arith.truncf %13 : vector<16x128xf32> to vector<16x128xbf16>
    %15 = tpu.concatenate %14, %12 in 1 : vector<16x128xbf16>, vector<16x128xbf16> -> vector<16x256xbf16>
    %c0_8 = arith.constant 0 : index
    %c0_9 = arith.constant 0 : index
    %16 = vector.load %arg3[%c0_8, %c0_9] : memref<256x128xbf16, #tpu.memory_space<vmem>>, vector<256x128xbf16>
    %cst_10 = arith.constant dense<0.000000e+00> : vector<16x128xf32>
    %17 = tpu.matmul %15, %16, %cst_10 {dimension_numbers = #tpu.dot_dimension_numbers<[1], [0], [0], [1], [0, 0, 1, 1], [], []>} : vector<16x256xbf16>, vector<256x128xbf16>, vector<16x128xf32> -> vector<16x128xf32>
    %c0_11 = arith.constant 0 : index
    %c0_12 = arith.constant 0 : index
    %18 = vector.load %arg4[%c0_11, %c0_12] : memref<1x128xf32, #tpu.memory_space<vmem>>, vector<1x128xf32>
    %19 = vector.broadcast %18 : vector<1x128xf32> to vector<16x128xf32>
    %20 = arith.addf %17, %19 : vector<16x128xf32>
    %cst_13 = arith.constant 0.000000e+00 : f32
    %21 = vector.broadcast %cst_13 : f32 to vector<16x128xf32>
    %22 = arith.maximumf %20, %21 : vector<16x128xf32>
    %c0_14 = arith.constant 0 : index
    %c0_15 = arith.constant 0 : index
    %23 = vector.load %arg5[%c0_14, %c0_15] : memref<1x128xf32, #tpu.memory_space<vmem>>, vector<1x128xf32>
    %24 = vector.broadcast %23 : vector<1x128xf32> to vector<16x128xf32>
    %25 = arith.mulf %22, %24 : vector<16x128xf32>
    %cst_16 = arith.constant dense<0.000000e+00> : vector<16xf32>
    %26 = vector.multi_reduction <add>, %25, %cst_16 [1] : vector<16x128xf32> to vector<16xf32>
    %27 = vector.shape_cast %26 : vector<16xf32> to vector<16x1xf32>
    %28 = math.tanh %27 : vector<16x1xf32>
    %cst_17 = arith.constant 1.000000e+00 : f32
    %29 = vector.broadcast %cst_17 : f32 to vector<16x1xf32>
    %30 = arith.subf %29, %9 : vector<16x1xf32>
    %cst_18 = arith.constant -1.000000e+30 : f32
    %31 = vector.broadcast %cst_18 : f32 to vector<16x1xf32>
    %32 = arith.mulf %30, %31 : vector<16x1xf32>
    %33 = arith.addf %28, %32 : vector<16x1xf32>
    %34 = vector.shape_cast %33 : vector<16x1xf32> to vector<16x1xf32>
    %35 = vector.broadcast %34 : vector<16x1xf32> to vector<16x16xf32>
    %36 = tpu.transpose %35, [1, 0] : vector<16x16xf32> -> vector<16x16xf32>
    %37 = vector.broadcast %33 : vector<16x1xf32> to vector<16x16xf32>
    %38 = arith.cmpf ogt, %36, %37 : vector<16x16xf32>
    %39 = arith.extui %38 : vector<16x16xi1> to vector<16x16xi32>
    %40 = arith.sitofp %39 : vector<16x16xi32> to vector<16x16xf32>
    %41 = vector.broadcast %33 : vector<16x1xf32> to vector<16x16xf32>
    %42 = arith.cmpf oeq, %36, %41 : vector<16x16xf32>
    %43 = arith.extui %42 : vector<16x16xi1> to vector<16x16xi32>
    %44 = arith.sitofp %43 : vector<16x16xi32> to vector<16x16xf32>
    %45 = arith.mulf %44, %8 : vector<16x16xf32>
    %46 = arith.addf %40, %45 : vector<16x16xf32>
    %cst_19 = arith.constant dense<0.000000e+00> : vector<16xf32>
    %47 = vector.multi_reduction <add>, %46, %cst_19 [1] : vector<16x16xf32> to vector<16xf32>
    %48 = vector.shape_cast %47 : vector<16xf32> to vector<16x1xf32>
    %cst_20 = arith.constant 1.300000e+01 : f32
    %49 = vector.broadcast %cst_20 : f32 to vector<16x1xf32>
    %50 = arith.cmpf olt, %48, %49 : vector<16x1xf32>
    %51 = arith.extui %50 : vector<16x1xi1> to vector<16x1xi32>
    %52 = arith.sitofp %51 : vector<16x1xi32> to vector<16x1xf32>
    %53 = arith.mulf %52, %9 : vector<16x1xf32>
    %54 = vector.broadcast %28 : vector<16x1xf32> to vector<16x128xf32>
    %55 = arith.mulf %22, %54 : vector<16x128xf32>
    %56 = vector.broadcast %53 : vector<16x1xf32> to vector<16x128xf32>
    %57 = arith.mulf %55, %56 : vector<16x128xf32>
    %cst_21 = arith.constant 1.000000e+00 : f32
    %58 = vector.broadcast %cst_21 : f32 to vector<16x1xf32>
    %59 = arith.subf %58, %53 : vector<16x1xf32>
    %cst_22 = arith.constant -1.000000e+30 : f32
    %60 = vector.broadcast %cst_22 : f32 to vector<16x1xf32>
    %61 = arith.mulf %59, %60 : vector<16x1xf32>
    %62 = vector.broadcast %61 : vector<16x1xf32> to vector<16x128xf32>
    %63 = arith.addf %57, %62 : vector<16x128xf32>
    %cst_23 = arith.constant dense<0xFF800000> : vector<128xf32>
    %64 = vector.multi_reduction <maximumf>, %63, %cst_23 [0] : vector<16x128xf32> to vector<128xf32>
    %65 = vector.shape_cast %64 : vector<128xf32> to vector<1x128xf32>
    %66 = arith.addf %10, %65 : vector<1x128xf32>
    %cst_24 = arith.constant dense<0.000000e+00> : vector<128xf32>
    %67 = vector.multi_reduction <add>, %57, %cst_24 [0] : vector<16x128xf32> to vector<128xf32>
    %68 = vector.shape_cast %67 : vector<128xf32> to vector<1x128xf32>
    %cst_25 = arith.constant 0.0769230798 : f32
    %69 = vector.broadcast %cst_25 : f32 to vector<1x128xf32>
    %70 = arith.mulf %68, %69 : vector<1x128xf32>
    %71 = arith.addf %11, %70 : vector<1x128xf32>
    %72 = arith.truncf %57 : vector<16x128xf32> to vector<16x128xbf16>
    %cst_26 = arith.constant dense<0.000000e+00> : vector<16x128xf32>
    %73 = tpu.matmul %1, %72, %cst_26 {dimension_numbers = #tpu.dot_dimension_numbers<[1], [0], [0], [1], [0, 0, 1, 1], [], []>} : vector<16x16xbf16>, vector<16x128xbf16>, vector<16x128xf32> -> vector<16x128xf32>
    %74 = arith.truncf %73 : vector<16x128xf32> to vector<16x128xbf16>
    %75 = tpu.concatenate %74, %72 in 1 : vector<16x128xbf16>, vector<16x128xbf16> -> vector<16x256xbf16>
    %c0_27 = arith.constant 0 : index
    %c0_28 = arith.constant 0 : index
    %76 = vector.load %arg6[%c0_27, %c0_28] : memref<256x128xbf16, #tpu.memory_space<vmem>>, vector<256x128xbf16>
    %cst_29 = arith.constant dense<0.000000e+00> : vector<16x128xf32>
    %77 = tpu.matmul %75, %76, %cst_29 {dimension_numbers = #tpu.dot_dimension_numbers<[1], [0], [0], [1], [0, 0, 1, 1], [], []>} : vector<16x256xbf16>, vector<256x128xbf16>, vector<16x128xf32> -> vector<16x128xf32>
    %c0_30 = arith.constant 0 : index
    %c0_31 = arith.constant 0 : index
    %78 = vector.load %arg7[%c0_30, %c0_31] : memref<1x128xf32, #tpu.memory_space<vmem>>, vector<1x128xf32>
    %79 = vector.broadcast %78 : vector<1x128xf32> to vector<16x128xf32>
    %80 = arith.addf %77, %79 : vector<16x128xf32>
    %cst_32 = arith.constant 0.000000e+00 : f32
    %81 = vector.broadcast %cst_32 : f32 to vector<16x128xf32>
    %82 = arith.maximumf %80, %81 : vector<16x128xf32>
    %c0_33 = arith.constant 0 : index
    %c0_34 = arith.constant 0 : index
    %83 = vector.load %arg8[%c0_33, %c0_34] : memref<1x128xf32, #tpu.memory_space<vmem>>, vector<1x128xf32>
    %84 = vector.broadcast %83 : vector<1x128xf32> to vector<16x128xf32>
    %85 = arith.mulf %82, %84 : vector<16x128xf32>
    %cst_35 = arith.constant dense<0.000000e+00> : vector<16xf32>
    %86 = vector.multi_reduction <add>, %85, %cst_35 [1] : vector<16x128xf32> to vector<16xf32>
    %87 = vector.shape_cast %86 : vector<16xf32> to vector<16x1xf32>
    %88 = math.tanh %87 : vector<16x1xf32>
    %cst_36 = arith.constant 1.000000e+00 : f32
    %89 = vector.broadcast %cst_36 : f32 to vector<16x1xf32>
    %90 = arith.subf %89, %53 : vector<16x1xf32>
    %cst_37 = arith.constant -1.000000e+30 : f32
    %91 = vector.broadcast %cst_37 : f32 to vector<16x1xf32>
    %92 = arith.mulf %90, %91 : vector<16x1xf32>
    %93 = arith.addf %88, %92 : vector<16x1xf32>
    %94 = vector.shape_cast %93 : vector<16x1xf32> to vector<16x1xf32>
    %95 = vector.broadcast %94 : vector<16x1xf32> to vector<16x16xf32>
    %96 = tpu.transpose %95, [1, 0] : vector<16x16xf32> -> vector<16x16xf32>
    %97 = vector.broadcast %93 : vector<16x1xf32> to vector<16x16xf32>
    %98 = arith.cmpf ogt, %96, %97 : vector<16x16xf32>
    %99 = arith.extui %98 : vector<16x16xi1> to vector<16x16xi32>
    %100 = arith.sitofp %99 : vector<16x16xi32> to vector<16x16xf32>
    %101 = vector.broadcast %93 : vector<16x1xf32> to vector<16x16xf32>
    %102 = arith.cmpf oeq, %96, %101 : vector<16x16xf32>
    %103 = arith.extui %102 : vector<16x16xi1> to vector<16x16xi32>
    %104 = arith.sitofp %103 : vector<16x16xi32> to vector<16x16xf32>
    %105 = arith.mulf %104, %8 : vector<16x16xf32>
    %106 = arith.addf %100, %105 : vector<16x16xf32>
    %cst_38 = arith.constant dense<0.000000e+00> : vector<16xf32>
    %107 = vector.multi_reduction <add>, %106, %cst_38 [1] : vector<16x16xf32> to vector<16xf32>
    %108 = vector.shape_cast %107 : vector<16xf32> to vector<16x1xf32>
    %cst_39 = arith.constant 1.100000e+01 : f32
    %109 = vector.broadcast %cst_39 : f32 to vector<16x1xf32>
    %110 = arith.cmpf olt, %108, %109 : vector<16x1xf32>
    %111 = arith.extui %110 : vector<16x1xi1> to vector<16x1xi32>
    %112 = arith.sitofp %111 : vector<16x1xi32> to vector<16x1xf32>
    %113 = arith.mulf %112, %53 : vector<16x1xf32>
    %114 = vector.broadcast %88 : vector<16x1xf32> to vector<16x128xf32>
    %115 = arith.mulf %82, %114 : vector<16x128xf32>
    %116 = vector.broadcast %113 : vector<16x1xf32> to vector<16x128xf32>
    %117 = arith.mulf %115, %116 : vector<16x128xf32>
    %cst_40 = arith.constant 1.000000e+00 : f32
    %118 = vector.broadcast %cst_40 : f32 to vector<16x1xf32>
    %119 = arith.subf %118, %113 : vector<16x1xf32>
    %cst_41 = arith.constant -1.000000e+30 : f32
    %120 = vector.broadcast %cst_41 : f32 to vector<16x1xf32>
    %121 = arith.mulf %119, %120 : vector<16x1xf32>
    %122 = vector.broadcast %121 : vector<16x1xf32> to vector<16x128xf32>
    %123 = arith.addf %117, %122 : vector<16x128xf32>
    %cst_42 = arith.constant dense<0xFF800000> : vector<128xf32>
    %124 = vector.multi_reduction <maximumf>, %123, %cst_42 [0] : vector<16x128xf32> to vector<128xf32>
    %125 = vector.shape_cast %124 : vector<128xf32> to vector<1x128xf32>
    %126 = arith.addf %66, %125 : vector<1x128xf32>
    %cst_43 = arith.constant dense<0.000000e+00> : vector<128xf32>
    %127 = vector.multi_reduction <add>, %117, %cst_43 [0] : vector<16x128xf32> to vector<128xf32>
    %128 = vector.shape_cast %127 : vector<128xf32> to vector<1x128xf32>
    %cst_44 = arith.constant 0.0909090936 : f32
    %129 = vector.broadcast %cst_44 : f32 to vector<1x128xf32>
    %130 = arith.mulf %128, %129 : vector<1x128xf32>
    %131 = arith.addf %71, %130 : vector<1x128xf32>
    %132 = arith.truncf %117 : vector<16x128xf32> to vector<16x128xbf16>
    %cst_45 = arith.constant dense<0.000000e+00> : vector<16x128xf32>
    %133 = tpu.matmul %1, %132, %cst_45 {dimension_numbers = #tpu.dot_dimension_numbers<[1], [0], [0], [1], [0, 0, 1, 1], [], []>} : vector<16x16xbf16>, vector<16x128xbf16>, vector<16x128xf32> -> vector<16x128xf32>
    %134 = arith.truncf %133 : vector<16x128xf32> to vector<16x128xbf16>
    %135 = tpu.concatenate %134, %132 in 1 : vector<16x128xbf16>, vector<16x128xbf16> -> vector<16x256xbf16>
    %c0_46 = arith.constant 0 : index
    %c0_47 = arith.constant 0 : index
    %136 = vector.load %arg9[%c0_46, %c0_47] : memref<256x128xbf16, #tpu.memory_space<vmem>>, vector<256x128xbf16>
    %cst_48 = arith.constant dense<0.000000e+00> : vector<16x128xf32>
    %137 = tpu.matmul %135, %136, %cst_48 {dimension_numbers = #tpu.dot_dimension_numbers<[1], [0], [0], [1], [0, 0, 1, 1], [], []>} : vector<16x256xbf16>, vector<256x128xbf16>, vector<16x128xf32> -> vector<16x128xf32>
    %c0_49 = arith.constant 0 : index
    %c0_50 = arith.constant 0 : index
    %138 = vector.load %arg10[%c0_49, %c0_50] : memref<1x128xf32, #tpu.memory_space<vmem>>, vector<1x128xf32>
    %139 = vector.broadcast %138 : vector<1x128xf32> to vector<16x128xf32>
    %140 = arith.addf %137, %139 : vector<16x128xf32>
    %cst_51 = arith.constant 0.000000e+00 : f32
    %141 = vector.broadcast %cst_51 : f32 to vector<16x128xf32>
    %142 = arith.maximumf %140, %141 : vector<16x128xf32>
    %c0_52 = arith.constant 0 : index
    %c0_53 = arith.constant 0 : index
    %143 = vector.load %arg11[%c0_52, %c0_53] : memref<1x128xf32, #tpu.memory_space<vmem>>, vector<1x128xf32>
    %144 = vector.broadcast %143 : vector<1x128xf32> to vector<16x128xf32>
    %145 = arith.mulf %142, %144 : vector<16x128xf32>
    %cst_54 = arith.constant dense<0.000000e+00> : vector<16xf32>
    %146 = vector.multi_reduction <add>, %145, %cst_54 [1] : vector<16x128xf32> to vector<16xf32>
    %147 = vector.shape_cast %146 : vector<16xf32> to vector<16x1xf32>
    %148 = math.tanh %147 : vector<16x1xf32>
    %cst_55 = arith.constant 1.000000e+00 : f32
    %149 = vector.broadcast %cst_55 : f32 to vector<16x1xf32>
    %150 = arith.subf %149, %113 : vector<16x1xf32>
    %cst_56 = arith.constant -1.000000e+30 : f32
    %151 = vector.broadcast %cst_56 : f32 to vector<16x1xf32>
    %152 = arith.mulf %150, %151 : vector<16x1xf32>
    %153 = arith.addf %148, %152 : vector<16x1xf32>
    %154 = vector.shape_cast %153 : vector<16x1xf32> to vector<16x1xf32>
    %155 = vector.broadcast %154 : vector<16x1xf32> to vector<16x16xf32>
    %156 = tpu.transpose %155, [1, 0] : vector<16x16xf32> -> vector<16x16xf32>
    %157 = vector.broadcast %153 : vector<16x1xf32> to vector<16x16xf32>
    %158 = arith.cmpf ogt, %156, %157 : vector<16x16xf32>
    %159 = arith.extui %158 : vector<16x16xi1> to vector<16x16xi32>
    %160 = arith.sitofp %159 : vector<16x16xi32> to vector<16x16xf32>
    %161 = vector.broadcast %153 : vector<16x1xf32> to vector<16x16xf32>
    %162 = arith.cmpf oeq, %156, %161 : vector<16x16xf32>
    %163 = arith.extui %162 : vector<16x16xi1> to vector<16x16xi32>
    %164 = arith.sitofp %163 : vector<16x16xi32> to vector<16x16xf32>
    %165 = arith.mulf %164, %8 : vector<16x16xf32>
    %166 = arith.addf %160, %165 : vector<16x16xf32>
    %cst_57 = arith.constant dense<0.000000e+00> : vector<16xf32>
    %167 = vector.multi_reduction <add>, %166, %cst_57 [1] : vector<16x16xf32> to vector<16xf32>
    %168 = vector.shape_cast %167 : vector<16xf32> to vector<16x1xf32>
    %cst_58 = arith.constant 9.000000e+00 : f32
    %169 = vector.broadcast %cst_58 : f32 to vector<16x1xf32>
    %170 = arith.cmpf olt, %168, %169 : vector<16x1xf32>
    %171 = arith.extui %170 : vector<16x1xi1> to vector<16x1xi32>
    %172 = arith.sitofp %171 : vector<16x1xi32> to vector<16x1xf32>
    %173 = arith.mulf %172, %113 : vector<16x1xf32>
    %174 = vector.broadcast %148 : vector<16x1xf32> to vector<16x128xf32>
    %175 = arith.mulf %142, %174 : vector<16x128xf32>
    %176 = vector.broadcast %173 : vector<16x1xf32> to vector<16x128xf32>
    %177 = arith.mulf %175, %176 : vector<16x128xf32>
    %cst_59 = arith.constant 1.000000e+00 : f32
    %178 = vector.broadcast %cst_59 : f32 to vector<16x1xf32>
    %179 = arith.subf %178, %173 : vector<16x1xf32>
    %cst_60 = arith.constant -1.000000e+30 : f32
    %180 = vector.broadcast %cst_60 : f32 to vector<16x1xf32>
    %181 = arith.mulf %179, %180 : vector<16x1xf32>
    %182 = vector.broadcast %181 : vector<16x1xf32> to vector<16x128xf32>
    %183 = arith.addf %177, %182 : vector<16x128xf32>
    %cst_61 = arith.constant dense<0xFF800000> : vector<128xf32>
    %184 = vector.multi_reduction <maximumf>, %183, %cst_61 [0] : vector<16x128xf32> to vector<128xf32>
    %185 = vector.shape_cast %184 : vector<128xf32> to vector<1x128xf32>
    %186 = arith.addf %126, %185 : vector<1x128xf32>
    %cst_62 = arith.constant dense<0.000000e+00> : vector<128xf32>
    %187 = vector.multi_reduction <add>, %177, %cst_62 [0] : vector<16x128xf32> to vector<128xf32>
    %188 = vector.shape_cast %187 : vector<128xf32> to vector<1x128xf32>
    %cst_63 = arith.constant 0.111111112 : f32
    %189 = vector.broadcast %cst_63 : f32 to vector<1x128xf32>
    %190 = arith.mulf %188, %189 : vector<1x128xf32>
    %191 = arith.addf %131, %190 : vector<1x128xf32>
    %192 = tpu.concatenate %186, %191 in 1 : vector<1x128xf32>, vector<1x128xf32> -> vector<1x256xf32>
    %193 = arith.truncf %192 : vector<1x256xf32> to vector<1x256xbf16>
    %c0_64 = arith.constant 0 : index
    %c0_65 = arith.constant 0 : index
    %194 = vector.load %arg12[%c0_64, %c0_65] : memref<256x64xbf16, #tpu.memory_space<vmem>>, vector<256x64xbf16>
    %cst_66 = arith.constant dense<0.000000e+00> : vector<1x64xf32>
    %195 = tpu.matmul %193, %194, %cst_66 {dimension_numbers = #tpu.dot_dimension_numbers<[1], [0], [0], [1], [0, 0, 1, 1], [], []>} : vector<1x256xbf16>, vector<256x64xbf16>, vector<1x64xf32> -> vector<1x64xf32>
    %c0_67 = arith.constant 0 : index
    %c0_68 = arith.constant 0 : index
    %196 = vector.load %arg13[%c0_67, %c0_68] : memref<1x64xf32, #tpu.memory_space<vmem>>, vector<1x64xf32>
    %197 = arith.addf %195, %196 : vector<1x64xf32>
    %cst_69 = arith.constant 0.000000e+00 : f32
    %198 = vector.broadcast %cst_69 : f32 to vector<1x64xf32>
    %199 = arith.maximumf %197, %198 : vector<1x64xf32>
    %200 = arith.truncf %199 : vector<1x64xf32> to vector<1x64xbf16>
    %c0_70 = arith.constant 0 : index
    %c0_71 = arith.constant 0 : index
    %201 = vector.load %arg14[%c0_70, %c0_71] : memref<64x32xbf16, #tpu.memory_space<vmem>>, vector<64x32xbf16>
    %cst_72 = arith.constant dense<0.000000e+00> : vector<1x32xf32>
    %202 = tpu.matmul %200, %201, %cst_72 {dimension_numbers = #tpu.dot_dimension_numbers<[1], [0], [0], [1], [0, 0, 1, 1], [], []>} : vector<1x64xbf16>, vector<64x32xbf16>, vector<1x32xf32> -> vector<1x32xf32>
    %c0_73 = arith.constant 0 : index
    %c0_74 = arith.constant 0 : index
    %203 = vector.load %arg15[%c0_73, %c0_74] : memref<1x32xf32, #tpu.memory_space<vmem>>, vector<1x32xf32>
    %204 = arith.addf %202, %203 : vector<1x32xf32>
    %cst_75 = arith.constant 0.000000e+00 : f32
    %205 = vector.broadcast %cst_75 : f32 to vector<1x32xf32>
    %206 = arith.maximumf %204, %205 : vector<1x32xf32>
    %207 = arith.truncf %206 : vector<1x32xf32> to vector<1x32xbf16>
    %c0_76 = arith.constant 0 : index
    %c0_77 = arith.constant 0 : index
    %208 = vector.load %arg16[%c0_76, %c0_77] : memref<32x8xbf16, #tpu.memory_space<vmem>>, vector<32x8xbf16>
    %cst_78 = arith.constant dense<0.000000e+00> : vector<1x8xf32>
    %209 = tpu.matmul %207, %208, %cst_78 {dimension_numbers = #tpu.dot_dimension_numbers<[1], [0], [0], [1], [0, 0, 1, 1], [], []>} : vector<1x32xbf16>, vector<32x8xbf16>, vector<1x8xf32> -> vector<1x8xf32>
    %c0_79 = arith.constant 0 : index
    %c0_80 = arith.constant 0 : index
    %210 = vector.load %arg17[%c0_79, %c0_80] : memref<1x8xf32, #tpu.memory_space<vmem>>, vector<1x8xf32>
    %211 = arith.addf %209, %210 : vector<1x8xf32>
    %cst_81 = arith.constant dense<0xFF800000> : vector<1xf32>
    %212 = vector.multi_reduction <maximumf>, %211, %cst_81 [1] : vector<1x8xf32> to vector<1xf32>
    %213 = vector.shape_cast %212 : vector<1xf32> to vector<1x1xf32>
    %214 = vector.broadcast %213 : vector<1x1xf32> to vector<1x8xf32>
    %215 = arith.subf %211, %214 : vector<1x8xf32>
    %216 = math.exp %215 : vector<1x8xf32>
    %cst_82 = arith.constant dense<0.000000e+00> : vector<1xf32>
    %217 = vector.multi_reduction <add>, %216, %cst_82 [1] : vector<1x8xf32> to vector<1xf32>
    %218 = vector.shape_cast %217 : vector<1xf32> to vector<1x1xf32>
    %219 = math.log %218 : vector<1x1xf32>
    %220 = arith.addf %213, %219 : vector<1x1xf32>
    %221 = vector.broadcast %220 : vector<1x1xf32> to vector<1x8xf32>
    %222 = arith.subf %211, %221 : vector<1x8xf32>
    %c0_83 = arith.constant 0 : index
    %c0_84 = arith.constant 0 : index
    %c0_85 = arith.constant 0 : index
    %223 = vector.load %arg18[%c0_83, %c0_84, %c0_85] : memref<1x1x8xf32, #tpu.memory_space<vmem>>, vector<1x1x8xf32>
    %224 = vector.shape_cast %223 : vector<1x1x8xf32> to vector<1x8xf32>
    %225 = vector.shape_cast %222 : vector<1x8xf32> to vector<1x1x8xf32>
    tpu.vector_store %arg18[%c0_83, %c0_84, %c0_85], %225 {strides = array<i32>} : memref<1x1x8xf32, #tpu.memory_space<vmem>>, vector<1x1x8xf32>,
    return
  }
  func.func @transform_0(%arg0: i32) -> (i32, i32, i32) {
    %c0_i32 = arith.constant 0 : i32
    %c0_i32_0 = arith.constant 0 : i32
    %c0_i32_1 = arith.constant 0 : i32
    return %arg0, %c0_i32, %c0_i32_0 : i32, i32, i32
  }
  func.func @transform_1(%arg0: i32) -> (i32, i32, i32) {
    %c0_i32 = arith.constant 0 : i32
    %c0_i32_0 = arith.constant 0 : i32
    %c0_i32_1 = arith.constant 0 : i32
    return %arg0, %c0_i32, %c0_i32_0 : i32, i32, i32
  }
  func.func @transform_2(%arg0: i32) -> (i32, i32) {
    %c0_i32 = arith.constant 0 : i32
    %c0_i32_0 = arith.constant 0 : i32
    %c0_i32_1 = arith.constant 0 : i32
    return %c0_i32, %c0_i32_0 : i32, i32
  }
  func.func @transform_3(%arg0: i32) -> (i32, i32) {
    %c0_i32 = arith.constant 0 : i32
    %c0_i32_0 = arith.constant 0 : i32
    %c0_i32_1 = arith.constant 0 : i32
    return %c0_i32, %c0_i32_0 : i32, i32
  }
  func.func @transform_4(%arg0: i32) -> (i32, i32) {
    %c0_i32 = arith.constant 0 : i32
    %c0_i32_0 = arith.constant 0 : i32
    %c0_i32_1 = arith.constant 0 : i32
    return %c0_i32, %c0_i32_0 : i32, i32
  }
  func.func @transform_5(%arg0: i32) -> (i32, i32) {
    %c0_i32 = arith.constant 0 : i32
    %c0_i32_0 = arith.constant 0 : i32
    %c0_i32_1 = arith.constant 0 : i32
    return %c0_i32, %c0_i32_0 : i32, i32
  }
  func.func @transform_6(%arg0: i32) -> (i32, i32) {
    %c0_i32 = arith.constant 0 : i32
    %c0_i32_0 = arith.constant 0 : i32
    %c0_i32_1 = arith.constant 0 : i32
    return %c0_i32, %c0_i32_0 : i32, i32
  }
  func.func @transform_7(%arg0: i32) -> (i32, i32) {
    %c0_i32 = arith.constant 0 : i32
    %c0_i32_0 = arith.constant 0 : i32
    %c0_i32_1 = arith.constant 0 : i32
    return %c0_i32, %c0_i32_0 : i32, i32
  }
  func.func @transform_8(%arg0: i32) -> (i32, i32) {
    %c0_i32 = arith.constant 0 : i32
    %c0_i32_0 = arith.constant 0 : i32
    %c0_i32_1 = arith.constant 0 : i32
    return %c0_i32, %c0_i32_0 : i32, i32
  }
  func.func @transform_9(%arg0: i32) -> (i32, i32) {
    %c0_i32 = arith.constant 0 : i32
    %c0_i32_0 = arith.constant 0 : i32
    %c0_i32_1 = arith.constant 0 : i32
    return %c0_i32, %c0_i32_0 : i32, i32
  }
  func.func @transform_10(%arg0: i32) -> (i32, i32) {
    %c0_i32 = arith.constant 0 : i32
    %c0_i32_0 = arith.constant 0 : i32
    %c0_i32_1 = arith.constant 0 : i32
    return %c0_i32, %c0_i32_0 : i32, i32
  }
  func.func @transform_11(%arg0: i32) -> (i32, i32) {
    %c0_i32 = arith.constant 0 : i32
    %c0_i32_0 = arith.constant 0 : i32
    %c0_i32_1 = arith.constant 0 : i32
    return %c0_i32, %c0_i32_0 : i32, i32
  }
  func.func @transform_12(%arg0: i32) -> (i32, i32) {
    %c0_i32 = arith.constant 0 : i32
    %c0_i32_0 = arith.constant 0 : i32
    %c0_i32_1 = arith.constant 0 : i32
    return %c0_i32, %c0_i32_0 : i32, i32
  }
  func.func @transform_13(%arg0: i32) -> (i32, i32) {
    %c0_i32 = arith.constant 0 : i32
    %c0_i32_0 = arith.constant 0 : i32
    %c0_i32_1 = arith.constant 0 : i32
    return %c0_i32, %c0_i32_0 : i32, i32
  }
  func.func @transform_14(%arg0: i32) -> (i32, i32) {
    %c0_i32 = arith.constant 0 : i32
    %c0_i32_0 = arith.constant 0 : i32
    %c0_i32_1 = arith.constant 0 : i32
    return %c0_i32, %c0_i32_0 : i32, i32
  }
  func.func @transform_15(%arg0: i32) -> (i32, i32) {
    %c0_i32 = arith.constant 0 : i32
    %c0_i32_0 = arith.constant 0 : i32
    %c0_i32_1 = arith.constant 0 : i32
    return %c0_i32, %c0_i32_0 : i32, i32
  }
  func.func @transform_16(%arg0: i32) -> (i32, i32) {
    %c0_i32 = arith.constant 0 : i32
    %c0_i32_0 = arith.constant 0 : i32
    %c0_i32_1 = arith.constant 0 : i32
    return %c0_i32, %c0_i32_0 : i32, i32
  }
  func.func @transform_17(%arg0: i32) -> (i32, i32, i32) {
    %c0_i32 = arith.constant 0 : i32
    %c0_i32_0 = arith.constant 0 : i32
    %c0_i32_1 = arith.constant 0 : i32
    return %arg0, %c0_i32, %c0_i32_0 : i32, i32, i32
  }
}

</mosaic_0001>

<llo_original>
// kernel: topk_pool_net_forward.1
$region0: #{topk_pool_net_forward.1}
  #allocation0 [shape = 'u32[]', space=smem, size = 0x4, offset = 0x4, fixed_abs, tag = 'smem constant byte address 0x4 - core index']
  #allocation1 [shape = 'u32[144,128]{1,0:T(1,128)}', space=vmem, size = 0x12000, scoped, tag = 'internal scratch']
  %s0 = inlined_call_operand.vmem [shape: bf16[2,16,16], index: 0, kind: input, shape index: {}]
  %s1 = inlined_call_operand.vmem [shape: f32[2,16,128], index: 1, kind: input, shape index: {}]
  %s2 = inlined_call_operand.vmem [shape: bf16[256,128], index: 2, kind: input, shape index: {}]
  %s3 = inlined_call_operand.vmem [shape: f32[1,128], index: 3, kind: input, shape index: {}]
  %s4 = inlined_call_operand.vmem [shape: f32[1,128], index: 4, kind: input, shape index: {}]
  %s5 = inlined_call_operand.vmem [shape: bf16[256,128], index: 5, kind: input, shape index: {}]
  %s6 = inlined_call_operand.vmem [shape: f32[1,128], index: 6, kind: input, shape index: {}]
  %s7 = inlined_call_operand.vmem [shape: f32[1,128], index: 7, kind: input, shape index: {}]
  %s8 = inlined_call_operand.vmem [shape: bf16[256,128], index: 8, kind: input, shape index: {}]
  %s9 = inlined_call_operand.vmem [shape: f32[1,128], index: 9, kind: input, shape index: {}]
  %s10 = inlined_call_operand.vmem [shape: f32[1,128], index: 10, kind: input, shape index: {}]
  %s11 = inlined_call_operand.vmem [shape: bf16[256,64], index: 11, kind: input, shape index: {}]
  %s12 = inlined_call_operand.vmem [shape: f32[1,64], index: 12, kind: input, shape index: {}]
  %s13 = inlined_call_operand.vmem [shape: bf16[64,32], index: 13, kind: input, shape index: {}]
  %s14 = inlined_call_operand.vmem [shape: f32[1,32], index: 14, kind: input, shape index: {}]
  %s15 = inlined_call_operand.vmem [shape: bf16[32,8], index: 15, kind: input, shape index: {}]
  %s16 = inlined_call_operand.vmem [shape: f32[1,8], index: 16, kind: input, shape index: {}]
  %s17 = inlined_call_operand.hbm [shape: f32[2,1,8], index: 17, kind: output, shape index: {}]
  %s18 = sld [smem:[#allocation0]]
  $region101: #{topk_pool_net_forward.1} parent=0
    _
  %s20 = ssub.s32 1, %s18
  %s21 = scalar_select 0, %s20, %s18
  $region1: #{topk_pool_net_forward.1} parent=0
    #allocation2 [shape = 'u8[1024]{0}', space=vmem, size = 0x400, scoped, tag = 'output window, operand 0']
    #allocation3 [shape = 's32[2]{0}', space=sflag, size = 0x8, scoped, tag = 'scoped memory for topk_pool_net_forward.1']
    %22 = vsyncpa [#allocation3], 0
    %s23 = scalar_lea.sflag [#allocation3], 1
    %24 = vsyncpa %s23, 0
    loop: start=0, step=1, limit=4
    $region2: #{topk_pool_net_forward.1} parent=1 // loop_pre_header
      _
    $region3: #{topk_pool_net_forward.1} parent=1 // loop_header
      %s26 = sphi 0, %s30
      %p27 = scmp.ge.s32.totalorder %s26, 4
      %s36 = sphi 0, %s38
      %s39 = sphi 0, %s36
      %s40 = sphi 0, %s39
      %s56 = sphi 0, %s40
      %s62 = sphi 0, %s64
      %s65 = sphi 0, %s62
      %s66 = sphi 0, %s65
      %s82 = sphi 0, %s66
      %s86 = sphi 0, %s86
      %s88 = sphi 0, %s86
      %s89 = sphi 0, %s88
      %s103 = sphi 0, %s89
      %s107 = sphi 0, %s107
      %s109 = sphi 0, %s107
      %s110 = sphi 0, %s109
      %s124 = sphi 0, %s110
      %s128 = sphi 0, %s128
      %s130 = sphi 0, %s128
      %s131 = sphi 0, %s130
      %s145 = sphi 0, %s131
      %s149 = sphi 0, %s149
      %s151 = sphi 0, %s149
      %s152 = sphi 0, %s151
      %s166 = sphi 0, %s152
      %s170 = sphi 0, %s170
      %s172 = sphi 0, %s170
      %s173 = sphi 0, %s172
      %s187 = sphi 0, %s173
      %s191 = sphi 0, %s191
      %s193 = sphi 0, %s191
      %s194 = sphi 0, %s193
      %s208 = sphi 0, %s194
      %s212 = sphi 0, %s212
      %s214 = sphi 0, %s212
      %s215 = sphi 0, %s214
      %s229 = sphi 0, %s215
      %s233 = sphi 0, %s233
      %s235 = sphi 0, %s233
      %s236 = sphi 0, %s235
      %s250 = sphi 0, %s236
      %s254 = sphi 0, %s254
      %s256 = sphi 0, %s254
      %s257 = sphi 0, %s256
      %s271 = sphi 0, %s257
      %s275 = sphi 0, %s275
      %s277 = sphi 0, %s275
      %s278 = sphi 0, %s277
      %s292 = sphi 0, %s278
      %s296 = sphi 0, %s296
      %s298 = sphi 0, %s296
      %s299 = sphi 0, %s298
      %s313 = sphi 0, %s299
      %s317 = sphi 0, %s317
      %s319 = sphi 0, %s317
      %s320 = sphi 0, %s319
      %s334 = sphi 0, %s320
      %s338 = sphi 0, %s338
      %s340 = sphi 0, %s338
      %s341 = sphi 0, %s340
      %s355 = sphi 0, %s341
      %s359 = sphi 0, %s359
      %s361 = sphi 0, %s359
      %s362 = sphi 0, %s361
      %s376 = sphi 0, %s362
      %s380 = sphi 0, %s380
      %s382 = sphi 0, %s380
      %s383 = sphi 0, %s382
      %s397 = sphi 0, %s383
      %s403 = sphi 0, %s405
      %s406 = sphi 0, %s403
      %s407 = sphi 0, %s406
      %s423 = sphi 0, %s407
    $region4: #{topk_pool_net_forward.1} parent=1 // loop_header_branch
      %29 = sbr.rel (%p27) target = $region8
    $region5: #{topk_pool_net_forward.1} parent=1 // loop_body
      %s31 = ssub.s32 %s26, 1
      %s32 = ssub.s32 %s26, 2
      %s33 = sadd.s32 %s26, 1
      %s34 = ssub.s32 %s26, %s33
      %p35 = scmp.eq.s32.totalorder %s34, 0
      %s37 = sadd.s32 %s36, 1
      %s38 = scalar_select %p35, %s36, %s37
      %p41 = pneg %p35
      %p42 = scmp.eq.s32.totalorder %s26, 1
      %p43 = por %p41, %p42
      %p44 = scmp.ne.s32.totalorder %s36, %s39
      %p45 = scmp.eq.s32.totalorder %s26, 0
      %p46 = por %p44, %p45
      %p47 = scmp.ne.s32.totalorder %s36, %s39
      %p48 = scmp.eq.s32.totalorder %s31, 1
      %p49 = por %p47, %p48
      %p50 = scmp.ne.s32.totalorder %s39, %s40
      %p51 = scmp.eq.s32.totalorder %s31, 0
      %p52 = por %p50, %p51
      %p53 = scmp.ne.s32.totalorder %s39, %s40
      %p54 = scmp.eq.s32.totalorder %s32, 1
      %p55 = por %p53, %p54
      %p57 = scmp.ne.s32.totalorder %s40, %s56
      %p58 = scmp.eq.s32.totalorder %s32, 0
      %p59 = por %p57, %p58
      %s60 = ssub.s32 %s26, %s33
      %p61 = scmp.eq.s32.totalorder %s60, 0
      %s63 = sadd.s32 %s62, 1
      %s64 = scalar_select %p61, %s62, %s63
      %p67 = pneg %p61
      %p68 = scmp.eq.s32.totalorder %s26, 1
      %p69 = por %p67, %p68
      %p70 = scmp.ne.s32.totalorder %s62, %s65
      %p71 = scmp.eq.s32.totalorder %s26, 0
      %p72 = por %p70, %p71
      %p73 = scmp.ne.s32.totalorder %s62, %s65
      %p74 = scmp.eq.s32.totalorder %s31, 1
      %p75 = por %p73, %p74
      %p76 = scmp.ne.s32.totalorder %s65, %s66
      %p77 = scmp.eq.s32.totalorder %s31, 0
      %p78 = por %p76, %p77
      %p79 = scmp.ne.s32.totalorder %s65, %s66
      %p80 = scmp.eq.s32.totalorder %s32, 1
      %p81 = por %p79, %p80
      %p83 = scmp.ne.s32.totalorder %s66, %s82
      %p84 = scmp.eq.s32.totalorder %s32, 0
      %p85 = por %p83, %p84
      %s87 = sadd.s32 %s86, 1
      %p90 = scmp.eq.s32.totalorder %s26, 1
      %p91 = scmp.ne.s32.totalorder %s86, %s88
      %p92 = scmp.eq.s32.totalorder %s26, 0
      %p93 = por %p91, %p92
      %p94 = scmp.ne.s32.totalorder %s86, %s88
      %p95 = scmp.eq.s32.totalorder %s31, 1
      %p96 = por %p94, %p95
      %p97 = scmp.ne.s32.totalorder %s88, %s89
      %p98 = scmp.eq.s32.totalorder %s31, 0
      %p99 = por %p97, %p98
      %p100 = scmp.ne.s32.totalorder %s88, %s89
      %p101 = scmp.eq.s32.totalorder %s32, 1
      %p102 = por %p100, %p101
      %p104 = scmp.ne.s32.totalorder %s89, %s103
      %p105 = scmp.eq.s32.totalorder %s32, 0
      %p106 = por %p104, %p105
      %s108 = sadd.s32 %s107, 1
      %p111 = scmp.eq.s32.totalorder %s26, 1
      %p112 = scmp.ne.s32.totalorder %s107, %s109
      %p113 = scmp.eq.s32.totalorder %s26, 0
      %p114 = por %p112, %p113
      %p115 = scmp.ne.s32.totalorder %s107, %s109
      %p116 = scmp.eq.s32.totalorder %s31, 1
      %p117 = por %p115, %p116
      %p118 = scmp.ne.s32.totalorder %s109, %s110
      %p119 = scmp.eq.s32.totalorder %s31, 0
      %p120 = por %p118, %p119
      %p121 = scmp.ne.s32.totalorder %s109, %s110
      %p122 = scmp.eq.s32.totalorder %s32, 1
      %p123 = por %p121, %p122
      %p125 = scmp.ne.s32.totalorder %s110, %s124
      %p126 = scmp.eq.s32.totalorder %s32, 0
      %p127 = por %p125, %p126
      %s129 = sadd.s32 %s128, 1
      %p132 = scmp.eq.s32.totalorder %s26, 1
      %p133 = scmp.ne.s32.totalorder %s128, %s130
      %p134 = scmp.eq.s32.totalorder %s26, 0
      %p135 = por %p133, %p134
      %p136 = scmp.ne.s32.totalorder %s128, %s130
      %p137 = scmp.eq.s32.totalorder %s31, 1
      %p138 = por %p136, %p137
      %p139 = scmp.ne.s32.totalorder %s130, %s131
      %p140 = scmp.eq.s32.totalorder %s31, 0
      %p141 = por %p139, %p140
      %p142 = scmp.ne.s32.totalorder %s130, %s131
      %p143 = scmp.eq.s32.totalorder %s32, 1
      %p144 = por %p142, %p143
      %p146 = scmp.ne.s32.totalorder %s131, %s145
      %p147 = scmp.eq.s32.totalorder %s32, 0
      %p148 = por %p146, %p147
      %s150 = sadd.s32 %s149, 1
      %p153 = scmp.eq.s32.totalorder %s26, 1
      %p154 = scmp.ne.s32.totalorder %s149, %s151
      %p155 = scmp.eq.s32.totalorder %s26, 0
      %p156 = por %p154, %p155
      %p157 = scmp.ne.s32.totalorder %s149, %s151
      %p158 = scmp.eq.s32.totalorder %s31, 1
      %p159 = por %p157, %p158
      %p160 = scmp.ne.s32.totalorder %s151, %s152
      %p161 = scmp.eq.s32.totalorder %s31, 0
      %p162 = por %p160, %p161
      %p163 = scmp.ne.s32.totalorder %s151, %s152
      %p164 = scmp.eq.s32.totalorder %s32, 1
      %p165 = por %p163, %p164
      %p167 = scmp.ne.s32.totalorder %s152, %s166
      %p168 = scmp.eq.s32.totalorder %s32, 0
      %p169 = por %p167, %p168
      %s171 = sadd.s32 %s170, 1
      %p174 = scmp.eq.s32.totalorder %s26, 1
      %p175 = scmp.ne.s32.totalorder %s170, %s172
      %p176 = scmp.eq.s32.totalorder %s26, 0
      %p177 = por %p175, %p176
      %p178 = scmp.ne.s32.totalorder %s170, %s172
      %p179 = scmp.eq.s32.totalorder %s31, 1
      %p180 = por %p178, %p179
      %p181 = scmp.ne.s32.totalorder %s172, %s173
      %p182 = scmp.eq.s32.totalorder %s31, 0
      %p183 = por %p181, %p182
      %p184 = scmp.ne.s32.totalorder %s172, %s173
      %p185 = scmp.eq.s32.totalorder %s32, 1
      %p186 = por %p184, %p185
      %p188 = scmp.ne.s32.totalorder %s173, %s187
      %p189 = scmp.eq.s32.totalorder %s32, 0
      %p190 = por %p188, %p189
      %s192 = sadd.s32 %s191, 1
      %p195 = scmp.eq.s32.totalorder %s26, 1
      %p196 = scmp.ne.s32.totalorder %s191, %s193
      %p197 = scmp.eq.s32.totalorder %s26, 0
      %p198 = por %p196, %p197
      %p199 = scmp.ne.s32.totalorder %s191, %s193
      %p200 = scmp.eq.s32.totalorder %s31, 1
      %p201 = por %p199, %p200
      %p202 = scmp.ne.s32.totalorder %s193, %s194
      %p203 = scmp.eq.s32.totalorder %s31, 0
      %p204 = por %p202, %p203
      %p205 = scmp.ne.s32.totalorder %s193, %s194
      %p206 = scmp.eq.s32.totalorder %s32, 1
      %p207 = por %p205, %p206
      %p209 = scmp.ne.s32.totalorder %s194, %s208
      %p210 = scmp.eq.s32.totalorder %s32, 0
      %p211 = por %p209, %p210
      %s213 = sadd.s32 %s212, 1
      %p216 = scmp.eq.s32.totalorder %s26, 1
      %p217 = scmp.ne.s32.totalorder %s212, %s214
      %p218 = scmp.eq.s32.totalorder %s26, 0
      %p219 = por %p217, %p218
      %p220 = scmp.ne.s32.totalorder %s212, %s214
      %p221 = scmp.eq.s32.totalorder %s31, 1
      %p222 = por %p220, %p221
      %p223 = scmp.ne.s32.totalorder %s214, %s215
      %p224 = scmp.eq.s32.totalorder %s31, 0
      %p225 = por %p223, %p224
      %p226 = scmp.ne.s32.totalorder %s214, %s215
      %p227 = scmp.eq.s32.totalorder %s32, 1
      %p228 = por %p226, %p227
      %p230 = scmp.ne.s32.totalorder %s215, %s229
      %p231 = scmp.eq.s32.totalorder %s32, 0
      %p232 = por %p230, %p231
      %s234 = sadd.s32 %s233, 1
      %p237 = scmp.eq.s32.totalorder %s26, 1
      %p238 = scmp.ne.s32.totalorder %s233, %s235
      %p239 = scmp.eq.s32.totalorder %s26, 0
      %p240 = por %p238, %p239
      %p241 = scmp.ne.s32.totalorder %s233, %s235
      %p242 = scmp.eq.s32.totalorder %s31, 1
      %p243 = por %p241, %p242
      %p244 = scmp.ne.s32.totalorder %s235, %s236
      %p245 = scmp.eq.s32.totalorder %s31, 0
      %p246 = por %p244, %p245
      %p247 = scmp.ne.s32.totalorder %s235, %s236
      %p248 = scmp.eq.s32.totalorder %s32, 1
      %p249 = por %p247, %p248
      %p251 = scmp.ne.s32.totalorder %s236, %s250
      %p252 = scmp.eq.s32.totalorder %s32, 0
      %p253 = por %p251, %p252
      %s255 = sadd.s32 %s254, 1
      %p258 = scmp.eq.s32.totalorder %s26, 1
      %p259 = scmp.ne.s32.totalorder %s254, %s256
      %p260 = scmp.eq.s32.totalorder %s26, 0
      %p261 = por %p259, %p260
      %p262 = scmp.ne.s32.totalorder %s254, %s256
      %p263 = scmp.eq.s32.totalorder %s31, 1
      %p264 = por %p262, %p263
      %p265 = scmp.ne.s32.totalorder %s256, %s257
      %p266 = scmp.eq.s32.totalorder %s31, 0
      %p267 = por %p265, %p266
      %p268 = scmp.ne.s32.totalorder %s256, %s257
      %p269 = scmp.eq.s32.totalorder %s32, 1
      %p270 = por %p268, %p269
      %p272 = scmp.ne.s32.totalorder %s257, %s271
      %p273 = scmp.eq.s32.totalorder %s32, 0
      %p274 = por %p272, %p273
      %s276 = sadd.s32 %s275, 1
      %p279 = scmp.eq.s32.totalorder %s26, 1
      %p280 = scmp.ne.s32.totalorder %s275, %s277
      %p281 = scmp.eq.s32.totalorder %s26, 0
      %p282 = por %p280, %p281
      %p283 = scmp.ne.s32.totalorder %s275, %s277
      %p284 = scmp.eq.s32.totalorder %s31, 1
      %p285 = por %p283, %p284
      %p286 = scmp.ne.s32.totalorder %s277, %s278
      %p287 = scmp.eq.s32.totalorder %s31, 0
      %p288 = por %p286, %p287
      %p289 = scmp.ne.s32.totalorder %s277, %s278
      %p290 = scmp.eq.s32.totalorder %s32, 1
      %p291 = por %p289, %p290
      %p293 = scmp.ne.s32.totalorder %s278, %s292
      %p294 = scmp.eq.s32.totalorder %s32, 0
      %p295 = por %p293, %p294
      %s297 = sadd.s32 %s296, 1
      %p300 = scmp.eq.s32.totalorder %s26, 1
      %p301 = scmp.ne.s32.totalorder %s296, %s298
      %p302 = scmp.eq.s32.totalorder %s26, 0
      %p303 = por %p301, %p302
      %p304 = scmp.ne.s32.totalorder %s296, %s298
      %p305 = scmp.eq.s32.totalorder %s31, 1
      %p306 = por %p304, %p305
      %p307 = scmp.ne.s32.totalorder %s298, %s299
      %p308 = scmp.eq.s32.totalorder %s31, 0
      %p309 = por %p307, %p308
      %p310 = scmp.ne.s32.totalorder %s298, %s299
      %p311 = scmp.eq.s32.totalorder %s32, 1
      %p312 = por %p310, %p311
      %p314 = scmp.ne.s32.totalorder %s299, %s313
      %p315 = scmp.eq.s32.totalorder %s32, 0
      %p316 = por %p314, %p315
      %s318 = sadd.s32 %s317, 1
      %p321 = scmp.eq.s32.totalorder %s26, 1
      %p322 = scmp.ne.s32.totalorder %s317, %s319
      %p323 = scmp.eq.s32.totalorder %s26, 0
      %p324 = por %p322, %p323
      %p325 = scmp.ne.s32.totalorder %s317, %s319
      %p326 = scmp.eq.s32.totalorder %s31, 1
      %p327 = por %p325, %p326
      %p328 = scmp.ne.s32.totalorder %s319, %s320
      %p329 = scmp.eq.s32.totalorder %s31, 0
      %p330 = por %p328, %p329
      %p331 = scmp.ne.s32.totalorder %s319, %s320
      %p332 = scmp.eq.s32.totalorder %s32, 1
      %p333 = por %p331, %p332
      %p335 = scmp.ne.s32.totalorder %s320, %s334
      %p336 = scmp.eq.s32.totalorder %s32, 0
      %p337 = por %p335, %p336
      %s339 = sadd.s32 %s338, 1
      %p342 = scmp.eq.s32.totalorder %s26, 1
      %p343 = scmp.ne.s32.totalorder %s338, %s340
      %p344 = scmp.eq.s32.totalorder %s26, 0
      %p345 = por %p343, %p344
      %p346 = scmp.ne.s32.totalorder %s338, %s340
      %p347 = scmp.eq.s32.totalorder %s31, 1
      %p348 = por %p346, %p347
      %p349 = scmp.ne.s32.totalorder %s340, %s341
      %p350 = scmp.eq.s32.totalorder %s31, 0
      %p351 = por %p349, %p350
      %p352 = scmp.ne.s32.totalorder %s340, %s341
      %p353 = scmp.eq.s32.totalorder %s32, 1
      %p354 = por %p352, %p353
      %p356 = scmp.ne.s32.totalorder %s341, %s355
      %p357 = scmp.eq.s32.totalorder %s32, 0
      %p358 = por %p356, %p357
      %s360 = sadd.s32 %s359, 1
      %p363 = scmp.eq.s32.totalorder %s26, 1
      %p364 = scmp.ne.s32.totalorder %s359, %s361
      %p365 = scmp.eq.s32.totalorder %s26, 0
      %p366 = por %p364, %p365
      %p367 = scmp.ne.s32.totalorder %s359, %s361
      %p368 = scmp.eq.s32.totalorder %s31, 1
      %p369 = por %p367, %p368
      %p370 = scmp.ne.s32.totalorder %s361, %s362
      %p371 = scmp.eq.s32.totalorder %s31, 0
      %p372 = por %p370, %p371
      %p373 = scmp.ne.s32.totalorder %s361, %s362
      %p374 = scmp.eq.s32.totalorder %s32, 1
      %p375 = por %p373, %p374
      %p377 = scmp.ne.s32.totalorder %s362, %s376
      %p378 = scmp.eq.s32.totalorder %s32, 0
      %p379 = por %p377, %p378
      %s381 = sadd.s32 %s380, 1
      %p384 = scmp.eq.s32.totalorder %s26, 1
      %p385 = scmp.ne.s32.totalorder %s380, %s382
      %p386 = scmp.eq.s32.totalorder %s26, 0
      %p387 = por %p385, %p386
      %p388 = scmp.ne.s32.totalorder %s380, %s382
      %p389 = scmp.eq.s32.totalorder %s31, 1
      %p390 = por %p388, %p389
      %p391 = scmp.ne.s32.totalorder %s382, %s383
      %p392 = scmp.eq.s32.totalorder %s31, 0
      %p393 = por %p391, %p392
      %p394 = scmp.ne.s32.totalorder %s382, %s383
      %p395 = scmp.eq.s32.totalorder %s32, 1
      %p396 = por %p394, %p395
      %p398 = scmp.ne.s32.totalorder %s383, %s397
      %p399 = scmp.eq.s32.totalorder %s32, 0
      %p400 = por %p398, %p399
      %s401 = ssub.s32 %s26, %s33
      %p402 = scmp.eq.s32.totalorder %s401, 0
      %s404 = sadd.s32 %s403, 1
      %s405 = scalar_select %p402, %s403, %s404
      %p408 = pneg %p402
      %p409 = scmp.eq.s32.totalorder %s26, 1
      %p410 = por %p408, %p409
      %p411 = scmp.ne.s32.totalorder %s403, %s406
      %p412 = scmp.eq.s32.totalorder %s26, 0
      %p413 = por %p411, %p412
      %p414 = scmp.ne.s32.totalorder %s403, %s406
      %p415 = scmp.eq.s32.totalorder %s31, 1
      %p416 = por %p414, %p415
      %p417 = scmp.ne.s32.totalorder %s406, %s407
      %p418 = scmp.eq.s32.totalorder %s31, 0
      %p419 = por %p417, %p418
      %p420 = scmp.ne.s32.totalorder %s406, %s407
      %p421 = scmp.eq.s32.totalorder %s32, 1
      %p422 = por %p420, %p421
      %p424 = scmp.ne.s32.totalorder %s407, %s423
      %p425 = scmp.eq.s32.totalorder %s32, 0
      %p426 = por %p424, %p425
      %p427 = scmp.le.s32.totalorder 1, %s26
      %p428 = scmp.lt.s32.totalorder %s26, 3
      %p429 = pnand %p427, %p428
      %p430 = pneg %p429
      // Predicated region
      $region9: #{topk_pool_net_forward.1} parent=5 // pred_check
        _
      $region10: #{topk_pool_net_forward.1} parent=5 // pred_check_branch
        %432 = sbr.rel (%p429) target = $region12
      $region11: #{topk_pool_net_forward.1} parent=5 // pred_region
        %s433 = ssub.s32 %s26, 1
        // Predicated region
        $region13: #{topk_pool_net_forward.1} parent=11 // pred_check
          %p434 = pneg %p99
        $region14: #{topk_pool_net_forward.1} parent=11 // pred_check_branch
          %436 = sbr.rel (%p434) target = $region16
        $region15: #{topk_pool_net_forward.1} parent=11 // pred_region
          _
        $region16: #{topk_pool_net_forward.1} parent=11 // pred_fallthru
          _
        // Predicated region
        $region17: #{topk_pool_net_forward.1} parent=11 // pred_check
          %p437 = pneg %p120
        $region18: #{topk_pool_net_forward.1} parent=11 // pred_check_branch
          %439 = sbr.rel (%p437) target = $region20
        $region19: #{topk_pool_net_forward.1} parent=11 // pred_region
          _
        $region20: #{topk_pool_net_forward.1} parent=11 // pred_fallthru
          _
        // Predicated region
        $region21: #{topk_pool_net_forward.1} parent=11 // pred_check
          %p440 = pneg %p141
        $region22: #{topk_pool_net_forward.1} parent=11 // pred_check_branch
          %442 = sbr.rel (%p440) target = $region24
        $region23: #{topk_pool_net_forward.1} parent=11 // pred_region
          _
        $region24: #{topk_pool_net_forward.1} parent=11 // pred_fallthru
          _
        // Predicated region
        $region25: #{topk_pool_net_forward.1} parent=11 // pred_check
          %p443 = pneg %p162
        $region26: #{topk_pool_net_forward.1} parent=11 // pred_check_branch
          %445 = sbr.rel (%p443) target = $region28
        $region27: #{topk_pool_net_forward.1} parent=11 // pred_region
          _
        $region28: #{topk_pool_net_forward.1} parent=11 // pred_fallthru
          _
        // Predicated region
        $region29: #{topk_pool_net_forward.1} parent=11 // pred_check
          %p446 = pneg %p183
        $region30: #{topk_pool_net_forward.1} parent=11 // pred_check_branch
          %448 = sbr.rel (%p446) target = $region32
        $region31: #{topk_pool_net_forward.1} parent=11 // pred_region
          _
        $region32: #{topk_pool_net_forward.1} parent=11 // pred_fallthru
          _
        // Predicated region
        $region33: #{topk_pool_net_forward.1} parent=11 // pred_check
          %p449 = pneg %p204
        $region34: #{topk_pool_net_forward.1} parent=11 // pred_check_branch
          %451 = sbr.rel (%p449) target = $region36
        $region35: #{topk_pool_net_forward.1} parent=11 // pred_region
          _
        $region36: #{topk_pool_net_forward.1} parent=11 // pred_fallthru
          _
        // Predicated region
        $region37: #{topk_pool_net_forward.1} parent=11 // pred_check
          %p452 = pneg %p225
        $region38: #{topk_pool_net_forward.1} parent=11 // pred_check_branch
          %454 = sbr.rel (%p452) target = $region40
        $region39: #{topk_pool_net_forward.1} parent=11 // pred_region
          _
        $region40: #{topk_pool_net_forward.1} parent=11 // pred_fallthru
          _
        // Predicated region
        $region41: #{topk_pool_net_forward.1} parent=11 // pred_check
          %p455 = pneg %p246
        $region42: #{topk_pool_net_forward.1} parent=11 // pred_check_branch
          %457 = sbr.rel (%p455) target = $region44
        $region43: #{topk_pool_net_forward.1} parent=11 // pred_region
          _
        $region44: #{topk_pool_net_forward.1} parent=11 // pred_fallthru
          _
        // Predicated region
        $region45: #{topk_pool_net_forward.1} parent=11 // pred_check
          %p458 = pneg %p267
        $region46: #{topk_pool_net_forward.1} parent=11 // pred_check_branch
          %460 = sbr.rel (%p458) target = $region48
        $region47: #{topk_pool_net_forward.1} parent=11 // pred_region
          _
        $region48: #{topk_pool_net_forward.1} parent=11 // pred_fallthru
          _
        // Predicated region
        $region49: #{topk_pool_net_forward.1} parent=11 // pred_check
          %p461 = pneg %p288
        $region50: #{topk_pool_net_forward.1} parent=11 // pred_check_branch
          %463 = sbr.rel (%p461) target = $region52
        $region51: #{topk_pool_net_forward.1} parent=11 // pred_region
          _
        $region52: #{topk_pool_net_forward.1} parent=11 // pred_fallthru
          _
        // Predicated region
        $region53: #{topk_pool_net_forward.1} parent=11 // pred_check
          %p464 = pneg %p309
        $region54: #{topk_pool_net_forward.1} parent=11 // pred_check_branch
          %466 = sbr.rel (%p464) target = $region56
        $region55: #{topk_pool_net_forward.1} parent=11 // pred_region
          _
        $region56: #{topk_pool_net_forward.1} parent=11 // pred_fallthru
          _
        // Predicated region
        $region57: #{topk_pool_net_forward.1} parent=11 // pred_check
          %p467 = pneg %p330
        $region58: #{topk_pool_net_forward.1} parent=11 // pred_check_branch
          %469 = sbr.rel (%p467) target = $region60
        $region59: #{topk_pool_net_forward.1} parent=11 // pred_region
          _
        $region60: #{topk_pool_net_forward.1} parent=11 // pred_fallthru
          _
        // Predicated region
        $region61: #{topk_pool_net_forward.1} parent=11 // pred_check
          %p470 = pneg %p351
        $region62: #{topk_pool_net_forward.1} parent=11 // pred_check_branch
          %472 = sbr.rel (%p470) target = $region64
        $region63: #{topk_pool_net_forward.1} parent=11 // pred_region
          _
        $region64: #{topk_pool_net_forward.1} parent=11 // pred_fallthru
          _
        // Predicated region
        $region65: #{topk_pool_net_forward.1} parent=11 // pred_check
          %p473 = pneg %p372
        $region66: #{topk_pool_net_forward.1} parent=11 // pred_check_branch
          %475 = sbr.rel (%p473) target = $region68
        $region67: #{topk_pool_net_forward.1} parent=11 // pred_region
          _
        $region68: #{topk_pool_net_forward.1} parent=11 // pred_fallthru
          _
        // Predicated region
        $region69: #{topk_pool_net_forward.1} parent=11 // pred_check
          %p476 = pneg %p393
        $region70: #{topk_pool_net_forward.1} parent=11 // pred_check_branch
          %478 = sbr.rel (%p476) target = $region72
        $region71: #{topk_pool_net_forward.1} parent=11 // pred_region
          _
        $region72: #{topk_pool_net_forward.1} parent=11 // pred_fallthru
          _
      $region12: #{topk_pool_net_forward.1} parent=5 // pred_fallthru
        _
      %p479 = scmp.lt.s32.totalorder %s26, 2
      // Predicated region
      $region73: #{topk_pool_net_forward.1} parent=5 // pred_check
        %p480 = pneg %p479
      $region74: #{topk_pool_net_forward.1} parent=5 // pred_check_branch
        %482 = sbr.rel (%p480) target = $region76
      $region75: #{topk_pool_net_forward.1} parent=5 // pred_region
        // Predicated region
        $region77: #{topk_pool_net_forward.1} parent=75 // pred_check
          %p483 = pneg %p46
        $region78: #{topk_pool_net_forward.1} parent=75 // pred_check_branch
          %485 = sbr.rel (%p483) target = $region80
        $region79: #{topk_pool_net_forward.1} parent=75 // pred_region
          %p486 = scmp.lt.s32.totalorder %s26, 1
          %s487 = scalar_select %p486, %s26, 1
          %s488 = smul.addr %s487, 2
          %s489 = smul.addr %s488, 4
          %s490 = scalar_lea.vmem %s0, %s489
        $region80: #{topk_pool_net_forward.1} parent=75 // pred_fallthru
          _
        // Predicated region
        $region81: #{topk_pool_net_forward.1} parent=75 // pred_check
          %p491 = pneg %p72
        $region82: #{topk_pool_net_forward.1} parent=75 // pred_check_branch
          %493 = sbr.rel (%p491) target = $region84
        $region83: #{topk_pool_net_forward.1} parent=75 // pred_region
          %p494 = scmp.lt.s32.totalorder %s26, 1
          %s495 = scalar_select %p494, %s26, 1
          %s496 = smul.addr %s495, 2
          %s497 = smul.addr %s496, 8
          %s498 = scalar_lea.vmem %s1, %s497
        $region84: #{topk_pool_net_forward.1} parent=75 // pred_fallthru
          _
      $region76: #{topk_pool_net_forward.1} parent=5 // pred_fallthru
        _
      %p499 = scmp.le.s32.totalorder 1, %s26
      %p500 = scmp.lt.s32.totalorder %s26, 3
      %p501 = pnand %p499, %p500
      %p502 = pneg %p501
      // Predicated region
      $region85: #{topk_pool_net_forward.1} parent=5 // pred_check
        _
      $region86: #{topk_pool_net_forward.1} parent=5 // pred_check_branch
        %504 = sbr.rel (%p501) target = $region88
      $region87: #{topk_pool_net_forward.1} parent=5 // pred_region
        %s505 = ssub.s32 %s26, 1
        %p506 = scmp.lt.s32.totalorder %s31, 1
        %s507 = scalar_select %p506, %s31, 1
        %s508 = smul.addr %s507, 2
        %s509 = smul.addr %s508, 4
        %s510 = scalar_lea.vmem %s0, %s509
        %p511 = pneg %p52
        %p512 = pneg %p49
        %p513 = scmp.lt.s32.totalorder %s31, 1
        %s514 = scalar_select %p513, %s31, 1
        %s515 = smul.addr %s514, 2
        %s516 = smul.addr %s515, 8
        %s517 = scalar_lea.vmem %s1, %s516
        %p518 = pneg %p78
        %p519 = pneg %p75
        %p520 = pneg %p99
        %p521 = pneg %p96
        %p522 = pneg %p120
        %p523 = pneg %p117
        %p524 = pneg %p141
        %p525 = pneg %p138
        %p526 = pneg %p162
        %p527 = pneg %p159
        %p528 = pneg %p183
        %p529 = pneg %p180
        %p530 = pneg %p204
        %p531 = pneg %p201
        %p532 = pneg %p225
        %p533 = pneg %p222
        %p534 = pneg %p246
        %p535 = pneg %p243
        %p536 = pneg %p267
        %p537 = pneg %p264
        %p538 = pneg %p288
        %p539 = pneg %p285
        %p540 = pneg %p309
        %p541 = pneg %p306
        %p542 = pneg %p330
        %p543 = pneg %p327
        %p544 = pneg %p351
        %p545 = pneg %p348
        %p546 = pneg %p372
        %p547 = pneg %p369
        %p548 = pneg %p393
        %p549 = pneg %p390
        %p550 = pneg %p419
        %p551 = pneg %p416
        %s552 = sand.u32 %s406, 1
        %s553 = scalar_lea.sflag [#allocation3], %s552
        %s554 = sand.u32 %s406, 1
        %s555 = scalar_lea.vmem [#allocation2], %s554
        %p556 = scmp.lt.s32.totalorder %s31, 1
        %s557 = scalar_select %p556, %s31, 1
        %s558 = smul.addr %s557, 2
        %s559 = smul.addr %s558, 4
        %s560 = scalar_lea.vmem %s0, %s559
        %p561 = scmp.lt.s32.totalorder %s31, 1
        %s562 = scalar_select %p561, %s31, 1
        %s563 = smul.addr %s562, 2
        %s564 = smul.addr %s563, 8
        %s565 = scalar_lea.vmem %s1, %s564
        %v567 = vld [vmem:[%s560] sm:$0xf]
        %v568 = vld [vmem:[%s560 + $0x4] sm:$0xf]
        %v569 = vld [vmem:[%s565] sm:$0xff]
        %v570 = vld [vmem:[%s565 + $0x8] sm:$0xff]
        %v571 = vlaneseq
        %v572 = vshrl.u32 %v571, 7
        %v573 = vadd.s32 %v572, 8
        %v574 = vlaneseq
        %v575 = vand.u32 %v574, 127
        %vm576 = vcmp.lt.s32.totalorder %v575, %v572
        %vm577 = vcmp.lt.s32.totalorder %v575, %v573
        %v578 = vsel %vm576, 1, 0
        %v579 = vsel %vm577, 1, 0
        %v580 = vcvt.s32.f32 %v578
        %v581 = vcvt.s32.f32 %v579
        %v582 = vpack.c.bf16 %v570, %v569
        %v585 = vunpack.c.l.b16 %v567
        %v586 = vunpack.c.l.b16 %v568
        %v587 = vpack.c.b16 %v586, %v585
        %vm588 = vcmask 130048
        %v590 = vsel %vm588, %v587, 0
        %592 = vmatprep.subr.bf16.mxu0 0
        %593 = vmatpush1.bf16.msra.mxu0 %v582
        %594 = vmatprep.subr.bf16.mxu0 0
        %595 = vmatpush1.bf16.msra.mxu0 0
        %596 = vmatprep.subr.bf16.mxu0 0
        %597 = vmatpush1.bf16.msra.mxu0 0
        %598 = vmatprep.subr.bf16.mxu0 0
        %599 = vmatpush1.bf16.msra.mxu0 0
        %600 = vmatprep.subr.bf16.mxu0 0
        %601 = vmatpush1.bf16.msra.mxu0 0
        %602 = vmatprep.subr.bf16.mxu0 0
        %603 = vmatpush1.bf16.msra.mxu0 0
        %604 = vmatprep.subr.bf16.mxu0 0
        %605 = vmatpush1.bf16.msra.mxu0 0
        %606 = vmatprep.subr.bf16.mxu0 0
        %607 = vmatpush1.bf16.msra.mxu0 0
        %608 = vmatprep.subr.bf16.mxu0 0
        %609 = vmatpush1.bf16.msra.mxu0 0
        %610 = vmatprep.subr.bf16.mxu0 0
        %611 = vmatpush1.bf16.msra.mxu0 0
        %612 = vmatprep.subr.bf16.mxu0 0
        %613 = vmatpush1.bf16.msra.mxu0 0
        %614 = vmatprep.subr.bf16.mxu0 0
        %615 = vmatpush1.bf16.msra.mxu0 0
        %616 = vmatprep.subr.bf16.mxu0 0
        %617 = vmatpush1.bf16.msra.mxu0 0
        %618 = vmatprep.subr.bf16.mxu0 0
        %619 = vmatpush1.bf16.msra.mxu0 0
        %620 = vmatprep.subr.bf16.mxu0 0
        %621 = vmatpush1.bf16.msra.mxu0 0
        %622 = vmatprep.subr.bf16.mxu0 0
        %623 = vmatpush1.bf16.msra.mxu0 0
        %624 = vmatprep.mubr.bf16.mxu0 0
        %625 = vmatmul.mubr.bf16.gmra.mrb[0].mxu0 %v590
        %v626 = vpop.f32.mrb[0].mxu0
        %v627 = vadd.f32 0.0, %v626
        %v628 = vpop.f32.mrb[0].mxu0
        %v629 = vpop.f32.mrb[0].mxu0
        %v630 = vadd.f32 0.0, %v629
        %v631 = vpop.f32.mrb[0].mxu0
        %632 = vdwg.mxu0
        %v633 = vpack.c.bf16 %v630, %v627
        %v634 = vld [vmem:[%s2] sm:$0xf]
        %v635 = vld [vmem:[%s2 + $0x4] sm:$0xf]
        %v636 = vld [vmem:[%s2 + $0x8] sm:$0xf]
        %v637 = vld [vmem:[%s2 + $0xc] sm:$0xf]
        %v638 = vld [vmem:[%s2 + $0x10] sm:$0xf]
        %v639 = vld [vmem:[%s2 + $0x14] sm:$0xf]
        %v640 = vld [vmem:[%s2 + $0x18] sm:$0xf]
        %v641 = vld [vmem:[%s2 + $0x1c] sm:$0xf]
        %v642 = vld [vmem:[%s2 + $0x20] sm:$0xf]
        %v643 = vld [vmem:[%s2 + $0x24] sm:$0xf]
        %v644 = vld [vmem:[%s2 + $0x28] sm:$0xf]
        %v645 = vld [vmem:[%s2 + $0x2c] sm:$0xf]
        %v646 = vld [vmem:[%s2 + $0x30] sm:$0xf]
        %v647 = vld [vmem:[%s2 + $0x34] sm:$0xf]
        %v648 = vld [vmem:[%s2 + $0x38] sm:$0xf]
        %v649 = vld [vmem:[%s2 + $0x3c] sm:$0xf]
        %v650 = vld [vmem:[%s2 + $0x40] sm:$0xf]
        %v651 = vld [vmem:[%s2 + $0x44] sm:$0xf]
        %v652 = vld [vmem:[%s2 + $0x48] sm:$0xf]
        %v653 = vld [vmem:[%s2 + $0x4c] sm:$0xf]
        %v654 = vld [vmem:[%s2 + $0x50] sm:$0xf]
        %v655 = vld [vmem:[%s2 + $0x54] sm:$0xf]
        %v656 = vld [vmem:[%s2 + $0x58] sm:$0xf]
        %v657 = vld [vmem:[%s2 + $0x5c] sm:$0xf]
        %v658 = vld [vmem:[%s2 + $0x60] sm:$0xf]
        %v659 = vld [vmem:[%s2 + $0x64] sm:$0xf]
        %v660 = vld [vmem:[%s2 + $0x68] sm:$0xf]
        %v661 = vld [vmem:[%s2 + $0x6c] sm:$0xf]
        %v662 = vld [vmem:[%s2 + $0x70] sm:$0xf]
        %v663 = vld [vmem:[%s2 + $0x74] sm:$0xf]
        %v664 = vld [vmem:[%s2 + $0x78] sm:$0xf]
        %v665 = vld [vmem:[%s2 + $0x7c] sm:$0xf]
        %v666 = vld [vmem:[%s3] sm:$0x1]
        %v668 = vlaneseq
        %v669 = vshrl.u32 %v668, 7
        %v670 = vsub.s32 0, %v669
        %v671 = vrot.slane %v666, %v670
        %v705 = vunpack.c.l.b16 %v634
        %v706 = vunpack.c.l.b16 %v635
        %v707 = vunpack.c.l.b16 %v636
        %v708 = vunpack.c.l.b16 %v637
        %v709 = vunpack.c.l.b16 %v638
        %v710 = vunpack.c.l.b16 %v639
        %v711 = vunpack.c.l.b16 %v640
        %v712 = vunpack.c.l.b16 %v641
        %v713 = vunpack.c.l.b16 %v642
        %v714 = vunpack.c.l.b16 %v643
        %v715 = vunpack.c.l.b16 %v644
        %v716 = vunpack.c.l.b16 %v645
        %v717 = vunpack.c.l.b16 %v646
        %v718 = vunpack.c.l.b16 %v647
        %v719 = vunpack.c.l.b16 %v648
        %v720 = vunpack.c.l.b16 %v649
        %v721 = vunpack.c.l.b16 %v650
        %v722 = vunpack.c.l.b16 %v651
        %v723 = vunpack.c.l.b16 %v652
        %v724 = vunpack.c.l.b16 %v653
        %v725 = vunpack.c.l.b16 %v654
        %v726 = vunpack.c.l.b16 %v655
        %v727 = vunpack.c.l.b16 %v656
        %v728 = vunpack.c.l.b16 %v657
        %v729 = vunpack.c.l.b16 %v658
        %v730 = vunpack.c.l.b16 %v659
        %v731 = vunpack.c.l.b16 %v660
        %v732 = vunpack.c.l.b16 %v661
        %v733 = vunpack.c.l.b16 %v662
        %v734 = vunpack.c.l.b16 %v663
        %v735 = vunpack.c.l.b16 %v664
        %v736 = vunpack.c.l.b16 %v665
        %v737 = vpack.c.b16 %v706, %v705
        %v738 = vpack.c.b16 %v708, %v707
        %v739 = vpack.c.b16 %v710, %v709
        %v740 = vpack.c.b16 %v712, %v711
        %v741 = vpack.c.b16 %v714, %v713
        %v742 = vpack.c.b16 %v716, %v715
        %v743 = vpack.c.b16 %v718, %v717
        %v744 = vpack.c.b16 %v720, %v719
        %v745 = vpack.c.b16 %v722, %v721
        %v746 = vpack.c.b16 %v724, %v723
        %v747 = vpack.c.b16 %v726, %v725
        %v748 = vpack.c.b16 %v728, %v727
        %v749 = vpack.c.b16 %v730, %v729
        %v750 = vpack.c.b16 %v732, %v731
        %v751 = vpack.c.b16 %v734, %v733
        %v752 = vpack.c.b16 %v736, %v735
        %769 = vmatprep.subr.bf16.mxu0 0
        %770 = vmatpush1.bf16.msra.mxu0 %v737
        %771 = vmatprep.subr.bf16.mxu0 0
        %772 = vmatpush1.bf16.msra.mxu0 %v738
        %773 = vmatprep.subr.bf16.mxu0 0
        %774 = vmatpush1.bf16.msra.mxu0 %v739
        %775 = vmatprep.subr.bf16.mxu0 0
        %776 = vmatpush1.bf16.msra.mxu0 %v740
        %777 = vmatprep.subr.bf16.mxu0 0
        %778 = vmatpush1.bf16.msra.mxu0 %v741
        %779 = vmatprep.subr.bf16.mxu0 0
        %780 = vmatpush1.bf16.msra.mxu0 %v742
        %781 = vmatprep.subr.bf16.mxu0 0
        %782 = vmatpush1.bf16.msra.mxu0 %v743
        %783 = vmatprep.subr.bf16.mxu0 0
        %784 = vmatpush1.bf16.msra.mxu0 %v744
        %785 = vmatprep.subr.bf16.mxu0 0
        %786 = vmatpush1.bf16.msra.mxu0 %v745
        %787 = vmatprep.subr.bf16.mxu0 0
        %788 = vmatpush1.bf16.msra.mxu0 %v746
        %789 = vmatprep.subr.bf16.mxu0 0
        %790 = vmatpush1.bf16.msra.mxu0 %v747
        %791 = vmatprep.subr.bf16.mxu0 0
        %792 = vmatpush1.bf16.msra.mxu0 %v748
        %793 = vmatprep.subr.bf16.mxu0 0
        %794 = vmatpush1.bf16.msra.mxu0 %v749
        %795 = vmatprep.subr.bf16.mxu0 0
        %796 = vmatpush1.bf16.msra.mxu0 %v750
        %797 = vmatprep.subr.bf16.mxu0 0
        %798 = vmatpush1.bf16.msra.mxu0 %v751
        %799 = vmatprep.subr.bf16.mxu0 0
        %800 = vmatpush1.bf16.msra.mxu0 %v752
        %801 = vmatprep.mubr.bf16.mxu0 %v582
        %802 = vmatmul.mubr.bf16.gmra.mrb[0].mxu0 %v633
        %v803 = vpop.f32.mrb[0].mxu0
        %v804 = vadd.f32 %v671, %v803
        %v805 = vpop.f32.mrb[0].mxu0
        %v806 = vpop.f32.mrb[0].mxu0
        %v807 = vadd.f32 %v671, %v806
        %v808 = vpop.f32.mrb[0].mxu0
        %809 = vdwg.mxu0
        %v810 = vmax.f32 %v804, 0.0
        %v811 = vmax.f32 %v807, 0.0
        %v812 = vld [vmem:[%s4] sm:$0x1]
        %v814 = vlaneseq
        %v815 = vshrl.u32 %v814, 7
        %v816 = vsub.s32 0, %v815
        %v817 = vrot.slane %v812, %v816
        %v819 = vmul.f32 %v810, %v817
        %v820 = vmul.f32 %v811, %v817
        %821 = vadd.xlane.f32.xlu0 %v819
        %v822 = vpop.xlane.xlu0 %821
        %823 = vadd.xlane.f32.xlu0 %v820
        %v824 = vpop.xlane.xlu0 %823
        %v825 = vtanh.pop %v822
        %v826 = vtanh.pop %v824
        %827 = vxpose.xlu0.b32.start [1/16] %v825, 128
        %828 = vxpose.xlu0.b32.cont [2/16] %v826, 128
        %829 = vxpose.xlu0.b32.cont [3/16] 0.0, 128
        %830 = vxpose.xlu0.b32.cont [4/16] 0.0, 128
        %831 = vxpose.xlu0.b32.cont [5/16] 0.0, 128
        %832 = vxpose.xlu0.b32.cont [6/16] 0.0, 128
        %833 = vxpose.xlu0.b32.cont [7/16] 0.0, 128
        %834 = vxpose.xlu0.b32.cont [8/16] 0.0, 128
        %835 = vxpose.xlu0.b32.cont [9/16] 0.0, 128
        %836 = vxpose.xlu0.b32.cont [10/16] 0.0, 128
        %837 = vxpose.xlu0.b32.cont [11/16] 0.0, 128
        %838 = vxpose.xlu0.b32.cont [12/16] 0.0, 128
        %839 = vxpose.xlu0.b32.cont [13/16] 0.0, 128
        %840 = vxpose.xlu0.b32.cont [14/16] 0.0, 128
        %841 = vxpose.xlu0.b32.cont [15/16] 0.0, 128
        %842 = vxpose.xlu0.b32.end [16/16] 0.0, 128
        %v843 = vpop.trf.xlu0
        %v844 = vpop.trf.xlu0
        %v845 = vpop.trf.xlu0
        %v846 = vpop.trf.xlu0
        %v847 = vpop.trf.xlu0
        %v848 = vpop.trf.xlu0
        %v849 = vpop.trf.xlu0
        %v850 = vpop.trf.xlu0
        %v851 = vpop.trf.xlu0
        %v852 = vpop.trf.xlu0
        %v853 = vpop.trf.xlu0
        %v854 = vpop.trf.xlu0
        %v855 = vpop.trf.xlu0
        %v856 = vpop.trf.xlu0
        %v857 = vpop.trf.xlu0
        %v858 = vpop.trf.xlu0
        %vm859 = vcmp.gt.f32.partialorder %v843, %v825
        %vm860 = vcmp.gt.f32.partialorder %v844, %v826
        %v861 = vsel %vm859, 1, 0
        %v862 = vsel %vm860, 1, 0
        %v863 = vcvt.s32.f32 %v861
        %v864 = vcvt.s32.f32 %v862
        %vm865 = vcmp.eq.f32.partialorder %v843, %v825
        %vm866 = vcmp.eq.f32.partialorder %v844, %v826
        %v867 = vsel %vm865, 1, 0
        %v868 = vsel %vm866, 1, 0
        %v869 = vcvt.s32.f32 %v867
        %v870 = vcvt.s32.f32 %v868
        %v871 = vmul.f32 %v869, %v580
        %v872 = vmul.f32 %v870, %v581
        %v873 = vadd.f32 %v863, %v871
        %v874 = vadd.f32 %v864, %v872
        %v875 = vsel %vm588, %v873, 0.0
        %876 = vadd.xlane.f32.xlu0 %v875
        %v877 = vpop.xlane.xlu0 %876
        %v878 = vsel %vm588, %v874, 0.0
        %879 = vadd.xlane.f32.xlu0 %v878
        %v880 = vpop.xlane.xlu0 %879
        %vm881 = vcmp.lt.f32.partialorder %v877, 13.0
        %vm882 = vcmp.lt.f32.partialorder %v880, 13.0
        %v883 = vsel %vm881, 1, 0
        %v884 = vsel %vm882, 1, 0
        %v885 = vcvt.s32.f32 %v883
        %v886 = vcvt.s32.f32 %v884
        %v887 = vmul.f32 %v810, %v825
        %v888 = vmul.f32 %v811, %v826
        %v889 = vmul.f32 %v887, %v885
        %v890 = vmul.f32 %v888, %v886
        %v891 = vsub.f32 1.0, %v885
        %v892 = vsub.f32 1.0, %v886
        %v893 = vmul.f32 %v891, -1e+30
        %v894 = vmul.f32 %v892, -1e+30
        %v895 = vadd.f32 %v889, %v893
        %v896 = vadd.f32 %v890, %v894
        %v897 = vmax.f32 %v895, %v896
        %v898 = vrot.slane %v897, 4
        %v899 = vmax.f32 %v897, %v898
        %v900 = vrot.slane %v899, 2
        %v901 = vmax.f32 %v899, %v900
        %v902 = vrot.slane %v901, 1
        %v903 = vmax.f32 %v901, %v902
        %v904 = vadd.f32 %v903, 0.0
        %v905 = vadd.f32 %v889, %v890
        %v906 = vrot.slane %v905, 4
        %v907 = vadd.f32 %v905, %v906
        %v908 = vrot.slane %v907, 2
        %v909 = vadd.f32 %v907, %v908
        %v910 = vrot.slane %v909, 1
        %v911 = vadd.f32 %v909, %v910
        %v912 = vmul.f32 %v911, 0.07692308
        %v913 = vadd.f32 %v912, 0.0
        %v914 = vpack.c.bf16 %v890, %v889
        %915 = vmatprep.subr.bf16.mxu0 0
        %916 = vmatpush1.bf16.msra.mxu0 %v914
        %917 = vmatprep.subr.bf16.mxu0 0
        %918 = vmatpush1.bf16.msra.mxu0 0
        %919 = vmatprep.subr.bf16.mxu0 0
        %920 = vmatpush1.bf16.msra.mxu0 0
        %921 = vmatprep.subr.bf16.mxu0 0
        %922 = vmatpush1.bf16.msra.mxu0 0
        %923 = vmatprep.subr.bf16.mxu0 0
        %924 = vmatpush1.bf16.msra.mxu0 0
        %925 = vmatprep.subr.bf16.mxu0 0
        %926 = vmatpush1.bf16.msra.mxu0 0
        %927 = vmatprep.subr.bf16.mxu0 0
        %928 = vmatpush1.bf16.msra.mxu0 0
        %929 = vmatprep.subr.bf16.mxu0 0
        %930 = vmatpush1.bf16.msra.mxu0 0
        %931 = vmatprep.subr.bf16.mxu0 0
        %932 = vmatpush1.bf16.msra.mxu0 0
        %933 = vmatprep.subr.bf16.mxu0 0
        %934 = vmatpush1.bf16.msra.mxu0 0
        %935 = vmatprep.subr.bf16.mxu0 0
        %936 = vmatpush1.bf16.msra.mxu0 0
        %937 = vmatprep.subr.bf16.mxu0 0
        %938 = vmatpush1.bf16.msra.mxu0 0
        %939 = vmatprep.subr.bf16.mxu0 0
        %940 = vmatpush1.bf16.msra.mxu0 0
        %941 = vmatprep.subr.bf16.mxu0 0
        %942 = vmatpush1.bf16.msra.mxu0 0
        %943 = vmatprep.subr.bf16.mxu0 0
        %944 = vmatpush1.bf16.msra.mxu0 0
        %945 = vmatprep.subr.bf16.mxu0 0
        %946 = vmatpush1.bf16.msra.mxu0 0
        %947 = vmatprep.mubr.bf16.mxu0 0
        %948 = vmatmul.mubr.bf16.gmra.mrb[0].mxu0 %v590
        %v949 = vpop.f32.mrb[0].mxu0
        %v950 = vadd.f32 0.0, %v949
        %v951 = vpop.f32.mrb[0].mxu0
        %v952 = vpop.f32.mrb[0].mxu0
        %v953 = vadd.f32 0.0, %v952
        %v954 = vpop.f32.mrb[0].mxu0
        %955 = vdwg.mxu0
        %v956 = vpack.c.bf16 %v953, %v950
        %v957 = vld [vmem:[%s5] sm:$0xf]
        %v958 = vld [vmem:[%s5 + $0x4] sm:$0xf]
        %v959 = vld [vmem:[%s5 + $0x8] sm:$0xf]
        %v960 = vld [vmem:[%s5 + $0xc] sm:$0xf]
        %v961 = vld [vmem:[%s5 + $0x10] sm:$0xf]
        %v962 = vld [vmem:[%s5 + $0x14] sm:$0xf]
        %v963 = vld [vmem:[%s5 + $0x18] sm:$0xf]
        %v964 = vld [vmem:[%s5 + $0x1c] sm:$0xf]
        %v965 = vld [vmem:[%s5 + $0x20] sm:$0xf]
        %v966 = vld [vmem:[%s5 + $0x24] sm:$0xf]
        %v967 = vld [vmem:[%s5 + $0x28] sm:$0xf]
        %v968 = vld [vmem:[%s5 + $0x2c] sm:$0xf]
        %v969 = vld [vmem:[%s5 + $0x30] sm:$0xf]
        %v970 = vld [vmem:[%s5 + $0x34] sm:$0xf]
        %v971 = vld [vmem:[%s5 + $0x38] sm:$0xf]
        %v972 = vld [vmem:[%s5 + $0x3c] sm:$0xf]
        %v973 = vld [vmem:[%s5 + $0x40] sm:$0xf]
        %v974 = vld [vmem:[%s5 + $0x44] sm:$0xf]
        %v975 = vld [vmem:[%s5 + $0x48] sm:$0xf]
        %v976 = vld [vmem:[%s5 + $0x4c] sm:$0xf]
        %v977 = vld [vmem:[%s5 + $0x50] sm:$0xf]
        %v978 = vld [vmem:[%s5 + $0x54] sm:$0xf]
        %v979 = vld [vmem:[%s5 + $0x58] sm:$0xf]
        %v980 = vld [vmem:[%s5 + $0x5c] sm:$0xf]
        %v981 = vld [vmem:[%s5 + $0x60] sm:$0xf]
        %v982 = vld [vmem:[%s5 + $0x64] sm:$0xf]
        %v983 = vld [vmem:[%s5 + $0x68] sm:$0xf]
        %v984 = vld [vmem:[%s5 + $0x6c] sm:$0xf]
        %v985 = vld [vmem:[%s5 + $0x70] sm:$0xf]
        %v986 = vld [vmem:[%s5 + $0x74] sm:$0xf]
        %v987 = vld [vmem:[%s5 + $0x78] sm:$0xf]
        %v988 = vld [vmem:[%s5 + $0x7c] sm:$0xf]
        %v989 = vld [vmem:[%s6] sm:$0x1]
        %v991 = vlaneseq
        %v992 = vshrl.u32 %v991, 7
        %v993 = vsub.s32 0, %v992
        %v994 = vrot.slane %v989, %v993
        %v1028 = vunpack.c.l.b16 %v957
        %v1029 = vunpack.c.l.b16 %v958
        %v1030 = vunpack.c.l.b16 %v959
        %v1031 = vunpack.c.l.b16 %v960
        %v1032 = vunpack.c.l.b16 %v961
        %v1033 = vunpack.c.l.b16 %v962
        %v1034 = vunpack.c.l.b16 %v963
        %v1035 = vunpack.c.l.b16 %v964
        %v1036 = vunpack.c.l.b16 %v965
        %v1037 = vunpack.c.l.b16 %v966
        %v1038 = vunpack.c.l.b16 %v967
        %v1039 = vunpack.c.l.b16 %v968
        %v1040 = vunpack.c.l.b16 %v969
        %v1041 = vunpack.c.l.b16 %v970
        %v1042 = vunpack.c.l.b16 %v971
        %v1043 = vunpack.c.l.b16 %v972
        %v1044 = vunpack.c.l.b16 %v973
        %v1045 = vunpack.c.l.b16 %v974
        %v1046 = vunpack.c.l.b16 %v975
        %v1047 = vunpack.c.l.b16 %v976
        %v1048 = vunpack.c.l.b16 %v977
        %v1049 = vunpack.c.l.b16 %v978
        %v1050 = vunpack.c.l.b16 %v979
        %v1051 = vunpack.c.l.b16 %v980
        %v1052 = vunpack.c.l.b16 %v981
        %v1053 = vunpack.c.l.b16 %v982
        %v1054 = vunpack.c.l.b16 %v983
        %v1055 = vunpack.c.l.b16 %v984
        %v1056 = vunpack.c.l.b16 %v985
        %v1057 = vunpack.c.l.b16 %v986
        %v1058 = vunpack.c.l.b16 %v987
        %v1059 = vunpack.c.l.b16 %v988
        %v1060 = vpack.c.b16 %v1029, %v1028
        %v1061 = vpack.c.b16 %v1031, %v1030
        %v1062 = vpack.c.b16 %v1033, %v1032
        %v1063 = vpack.c.b16 %v1035, %v1034
        %v1064 = vpack.c.b16 %v1037, %v1036
        %v1065 = vpack.c.b16 %v1039, %v1038
        %v1066 = vpack.c.b16 %v1041, %v1040
        %v1067 = vpack.c.b16 %v1043, %v1042
        %v1068 = vpack.c.b16 %v1045, %v1044
        %v1069 = vpack.c.b16 %v1047, %v1046
        %v1070 = vpack.c.b16 %v1049, %v1048
        %v1071 = vpack.c.b16 %v1051, %v1050
        %v1072 = vpack.c.b16 %v1053, %v1052
        %v1073 = vpack.c.b16 %v1055, %v1054
        %v1074 = vpack.c.b16 %v1057, %v1056
        %v1075 = vpack.c.b16 %v1059, %v1058
        %1092 = vmatprep.subr.bf16.mxu0 0
        %1093 = vmatpush1.bf16.msra.mxu0 %v1060
        %1094 = vmatprep.subr.bf16.mxu0 0
        %1095 = vmatpush1.bf16.msra.mxu0 %v1061
        %1096 = vmatprep.subr.bf16.mxu0 0
        %1097 = vmatpush1.bf16.msra.mxu0 %v1062
        %1098 = vmatprep.subr.bf16.mxu0 0
        %1099 = vmatpush1.bf16.msra.mxu0 %v1063
        %1100 = vmatprep.subr.bf16.mxu0 0
        %1101 = vmatpush1.bf16.msra.mxu0 %v1064
        %1102 = vmatprep.subr.bf16.mxu0 0
        %1103 = vmatpush1.bf16.msra.mxu0 %v1065
        %1104 = vmatprep.subr.bf16.mxu0 0
        %1105 = vmatpush1.bf16.msra.mxu0 %v1066
        %1106 = vmatprep.subr.bf16.mxu0 0
        %1107 = vmatpush1.bf16.msra.mxu0 %v1067
        %1108 = vmatprep.subr.bf16.mxu0 0
        %1109 = vmatpush1.bf16.msra.mxu0 %v1068
        %1110 = vmatprep.subr.bf16.mxu0 0
        %1111 = vmatpush1.bf16.msra.mxu0 %v1069
        %1112 = vmatprep.subr.bf16.mxu0 0
        %1113 = vmatpush1.bf16.msra.mxu0 %v1070
        %1114 = vmatprep.subr.bf16.mxu0 0
        %1115 = vmatpush1.bf16.msra.mxu0 %v1071
        %1116 = vmatprep.subr.bf16.mxu0 0
        %1117 = vmatpush1.bf16.msra.mxu0 %v1072
        %1118 = vmatprep.subr.bf16.mxu0 0
        %1119 = vmatpush1.bf16.msra.mxu0 %v1073
        %1120 = vmatprep.subr.bf16.mxu0 0
        %1121 = vmatpush1.bf16.msra.mxu0 %v1074
        %1122 = vmatprep.subr.bf16.mxu0 0
        %1123 = vmatpush1.bf16.msra.mxu0 %v1075
        %1124 = vmatprep.mubr.bf16.mxu0 %v914
        %1125 = vmatmul.mubr.bf16.gmra.mrb[0].mxu0 %v956
        %v1126 = vpop.f32.mrb[0].mxu0
        %v1127 = vadd.f32 %v994, %v1126
        %v1128 = vpop.f32.mrb[0].mxu0
        %v1129 = vpop.f32.mrb[0].mxu0
        %v1130 = vadd.f32 %v994, %v1129
        %v1131 = vpop.f32.mrb[0].mxu0
        %1132 = vdwg.mxu0
        %v1133 = vmax.f32 %v1127, 0.0
        %v1134 = vmax.f32 %v1130, 0.0
        %v1135 = vld [vmem:[%s7] sm:$0x1]
        %v1137 = vlaneseq
        %v1138 = vshrl.u32 %v1137, 7
        %v1139 = vsub.s32 0, %v1138
        %v1140 = vrot.slane %v1135, %v1139
        %v1142 = vmul.f32 %v1133, %v1140
        %v1143 = vmul.f32 %v1134, %v1140
        %1144 = vadd.xlane.f32.xlu0 %v1142
        %v1145 = vpop.xlane.xlu0 %1144
        %1146 = vadd.xlane.f32.xlu0 %v1143
        %v1147 = vpop.xlane.xlu0 %1146
        %v1148 = vtanh.pop %v1145
        %v1149 = vtanh.pop %v1147
        %v1150 = vadd.f32 %v1148, %v893
        %v1151 = vadd.f32 %v1149, %v894
        %1152 = vxpose.xlu0.b32.start [1/16] %v1150, 128
        %1153 = vxpose.xlu0.b32.cont [2/16] %v1151, 128
        %1154 = vxpose.xlu0.b32.cont [3/16] 0.0, 128
        %1155 = vxpose.xlu0.b32.cont [4/16] 0.0, 128
        %1156 = vxpose.xlu0.b32.cont [5/16] 0.0, 128
        %1157 = vxpose.xlu0.b32.cont [6/16] 0.0, 128
        %1158 = vxpose.xlu0.b32.cont [7/16] 0.0, 128
        %1159 = vxpose.xlu0.b32.cont [8/16] 0.0, 128
        %1160 = vxpose.xlu0.b32.cont [9/16] 0.0, 128
        %1161 = vxpose.xlu0.b32.cont [10/16] 0.0, 128
        %1162 = vxpose.xlu0.b32.cont [11/16] 0.0, 128
        %1163 = vxpose.xlu0.b32.cont [12/16] 0.0, 128
        %1164 = vxpose.xlu0.b32.cont [13/16] 0.0, 128
        %1165 = vxpose.xlu0.b32.cont [14/16] 0.0, 128
        %1166 = vxpose.xlu0.b32.cont [15/16] 0.0, 128
        %1167 = vxpose.xlu0.b32.end [16/16] 0.0, 128
        %v1168 = vpop.trf.xlu0
        %v1169 = vpop.trf.xlu0
        %v1170 = vpop.trf.xlu0
        %v1171 = vpop.trf.xlu0
        %v1172 = vpop.trf.xlu0
        %v1173 = vpop.trf.xlu0
        %v1174 = vpop.trf.xlu0
        %v1175 = vpop.trf.xlu0
        %v1176 = vpop.trf.xlu0
        %v1177 = vpop.trf.xlu0
        %v1178 = vpop.trf.xlu0
        %v1179 = vpop.trf.xlu0
        %v1180 = vpop.trf.xlu0
        %v1181 = vpop.trf.xlu0
        %v1182 = vpop.trf.xlu0
        %v1183 = vpop.trf.xlu0
        %vm1184 = vcmp.gt.f32.partialorder %v1168, %v1150
        %vm1185 = vcmp.gt.f32.partialorder %v1169, %v1151
        %v1186 = vsel %vm1184, 1, 0
        %v1187 = vsel %vm1185, 1, 0
        %v1188 = vcvt.s32.f32 %v1186
        %v1189 = vcvt.s32.f32 %v1187
        %vm1190 = vcmp.eq.f32.partialorder %v1168, %v1150
        %vm1191 = vcmp.eq.f32.partialorder %v1169, %v1151
        %v1192 = vsel %vm1190, 1, 0
        %v1193 = vsel %vm1191, 1, 0
        %v1194 = vcvt.s32.f32 %v1192
        %v1195 = vcvt.s32.f32 %v1193
        %v1196 = vmul.f32 %v1194, %v580
        %v1197 = vmul.f32 %v1195, %v581
        %v1198 = vadd.f32 %v1188, %v1196
        %v1199 = vadd.f32 %v1189, %v1197
        %v1200 = vsel %vm588, %v1198, 0.0
        %1201 = vadd.xlane.f32.xlu0 %v1200
        %v1202 = vpop.xlane.xlu0 %1201
        %v1203 = vsel %vm588, %v1199, 0.0
        %1204 = vadd.xlane.f32.xlu0 %v1203
        %v1205 = vpop.xlane.xlu0 %1204
        %vm1206 = vcmp.lt.f32.partialorder %v1202, 11.0
        %vm1207 = vcmp.lt.f32.partialorder %v1205, 11.0
        %v1208 = vsel %vm1206, 1, 0
        %v1209 = vsel %vm1207, 1, 0
        %v1210 = vcvt.s32.f32 %v1208
        %v1211 = vcvt.s32.f32 %v1209
        %v1212 = vmul.f32 %v1210, %v885
        %v1213 = vmul.f32 %v1211, %v886
        %v1214 = vmul.f32 %v1133, %v1148
        %v1215 = vmul.f32 %v1134, %v1149
        %v1216 = vmul.f32 %v1214, %v1212
        %v1217 = vmul.f32 %v1215, %v1213
        %v1218 = vsub.f32 1.0, %v1212
        %v1219 = vsub.f32 1.0, %v1213
        %v1220 = vmul.f32 %v1218, -1e+30
        %v1221 = vmul.f32 %v1219, -1e+30
        %v1222 = vadd.f32 %v1216, %v1220
        %v1223 = vadd.f32 %v1217, %v1221
        %v1224 = vmax.f32 %v1222, %v1223
        %v1225 = vrot.slane %v1224, 4
        %v1226 = vmax.f32 %v1224, %v1225
        %v1227 = vrot.slane %v1226, 2
        %v1228 = vmax.f32 %v1226, %v1227
        %v1229 = vrot.slane %v1228, 1
        %v1230 = vmax.f32 %v1228, %v1229
        %v1231 = vadd.f32 %v904, %v1230
        %v1232 = vadd.f32 %v1216, %v1217
        %v1233 = vrot.slane %v1232, 4
        %v1234 = vadd.f32 %v1232, %v1233
        %v1235 = vrot.slane %v1234, 2
        %v1236 = vadd.f32 %v1234, %v1235
        %v1237 = vrot.slane %v1236, 1
        %v1238 = vadd.f32 %v1236, %v1237
        %v1239 = vmul.f32 %v1238, 0.09090909
        %v1240 = vadd.f32 %v913, %v1239
        %v1241 = vpack.c.bf16 %v1217, %v1216
        %1242 = vmatprep.subr.bf16.mxu0 0
        %1243 = vmatpush1.bf16.msra.mxu0 %v1241
        %1244 = vmatprep.subr.bf16.mxu0 0
        %1245 = vmatpush1.bf16.msra.mxu0 0
        %1246 = vmatprep.subr.bf16.mxu0 0
        %1247 = vmatpush1.bf16.msra.mxu0 0
        %1248 = vmatprep.subr.bf16.mxu0 0
        %1249 = vmatpush1.bf16.msra.mxu0 0
        %1250 = vmatprep.subr.bf16.mxu0 0
        %1251 = vmatpush1.bf16.msra.mxu0 0
        %1252 = vmatprep.subr.bf16.mxu0 0
        %1253 = vmatpush1.bf16.msra.mxu0 0
        %1254 = vmatprep.subr.bf16.mxu0 0
        %1255 = vmatpush1.bf16.msra.mxu0 0
        %1256 = vmatprep.subr.bf16.mxu0 0
        %1257 = vmatpush1.bf16.msra.mxu0 0
        %1258 = vmatprep.subr.bf16.mxu0 0
        %1259 = vmatpush1.bf16.msra.mxu0 0
        %1260 = vmatprep.subr.bf16.mxu0 0
        %1261 = vmatpush1.bf16.msra.mxu0 0
        %1262 = vmatprep.subr.bf16.mxu0 0
        %1263 = vmatpush1.bf16.msra.mxu0 0
        %1264 = vmatprep.subr.bf16.mxu0 0
        %1265 = vmatpush1.bf16.msra.mxu0 0
        %1266 = vmatprep.subr.bf16.mxu0 0
        %1267 = vmatpush1.bf16.msra.mxu0 0
        %1268 = vmatprep.subr.bf16.mxu0 0
        %1269 = vmatpush1.bf16.msra.mxu0 0
        %1270 = vmatprep.subr.bf16.mxu0 0
        %1271 = vmatpush1.bf16.msra.mxu0 0
        %1272 = vmatprep.subr.bf16.mxu0 0
        %1273 = vmatpush1.bf16.msra.mxu0 0
        %1274 = vmatprep.mubr.bf16.mxu0 0
        %1275 = vmatmul.mubr.bf16.gmra.mrb[0].mxu0 %v590
        %v1276 = vpop.f32.mrb[0].mxu0
        %v1277 = vadd.f32 0.0, %v1276
        %v1278 = vpop.f32.mrb[0].mxu0
        %v1279 = vpop.f32.mrb[0].mxu0
        %v1280 = vadd.f32 0.0, %v1279
        %v1281 = vpop.f32.mrb[0].mxu0
        %1282 = vdwg.mxu0
        %v1283 = vpack.c.bf16 %v1280, %v1277
        %v1284 = vld [vmem:[%s8] sm:$0xf]
        %v1285 = vld [vmem:[%s8 + $0x4] sm:$0xf]
        %v1286 = vld [vmem:[%s8 + $0x8] sm:$0xf]
        %v1287 = vld [vmem:[%s8 + $0xc] sm:$0xf]
        %v1288 = vld [vmem:[%s8 + $0x10] sm:$0xf]
        %v1289 = vld [vmem:[%s8 + $0x14] sm:$0xf]
        %v1290 = vld [vmem:[%s8 + $0x18] sm:$0xf]
        %v1291 = vld [vmem:[%s8 + $0x1c] sm:$0xf]
        %v1292 = vld [vmem:[%s8 + $0x20] sm:$0xf]
        %v1293 = vld [vmem:[%s8 + $0x24] sm:$0xf]
        %v1294 = vld [vmem:[%s8 + $0x28] sm:$0xf]
        %v1295 = vld [vmem:[%s8 + $0x2c] sm:$0xf]
        %v1296 = vld [vmem:[%s8 + $0x30] sm:$0xf]
        %v1297 = vld [vmem:[%s8 + $0x34] sm:$0xf]
        %v1298 = vld [vmem:[%s8 + $0x38] sm:$0xf]
        %v1299 = vld [vmem:[%s8 + $0x3c] sm:$0xf]
        %v1300 = vld [vmem:[%s8 + $0x40] sm:$0xf]
        %v1301 = vld [vmem:[%s8 + $0x44] sm:$0xf]
        %v1302 = vld [vmem:[%s8 + $0x48] sm:$0xf]
        %v1303 = vld [vmem:[%s8 + $0x4c] sm:$0xf]
        %v1304 = vld [vmem:[%s8 + $0x50] sm:$0xf]
        %v1305 = vld [vmem:[%s8 + $0x54] sm:$0xf]
        %v1306 = vld [vmem:[%s8 + $0x58] sm:$0xf]
        %v1307 = vld [vmem:[%s8 + $0x5c] sm:$0xf]
        %v1308 = vld [vmem:[%s8 + $0x60] sm:$0xf]
        %v1309 = vld [vmem:[%s8 + $0x64] sm:$0xf]
        %v1310 = vld [vmem:[%s8 + $0x68] sm:$0xf]
        %v1311 = vld [vmem:[%s8 + $0x6c] sm:$0xf]
        %v1312 = vld [vmem:[%s8 + $0x70] sm:$0xf]
        %v1313 = vld [vmem:[%s8 + $0x74] sm:$0xf]
        %v1314 = vld [vmem:[%s8 + $0x78] sm:$0xf]
        %v1315 = vld [vmem:[%s8 + $0x7c] sm:$0xf]
        %v1316 = vld [vmem:[%s9] sm:$0x1]
        %v1318 = vlaneseq
        %v1319 = vshrl.u32 %v1318, 7
        %v1320 = vsub.s32 0, %v1319
        %v1321 = vrot.slane %v1316, %v1320
        %v1355 = vunpack.c.l.b16 %v1284
        %v1356 = vunpack.c.l.b16 %v1285
        %v1357 = vunpack.c.l.b16 %v1286
        %v1358 = vunpack.c.l.b16 %v1287
        %v1359 = vunpack.c.l.b16 %v1288
        %v1360 = vunpack.c.l.b16 %v1289
        %v1361 = vunpack.c.l.b16 %v1290
        %v1362 = vunpack.c.l.b16 %v1291
        %v1363 = vunpack.c.l.b16 %v1292
        %v1364 = vunpack.c.l.b16 %v1293
        %v1365 = vunpack.c.l.b16 %v1294
        %v1366 = vunpack.c.l.b16 %v1295
        %v1367 = vunpack.c.l.b16 %v1296
        %v1368 = vunpack.c.l.b16 %v1297
        %v1369 = vunpack.c.l.b16 %v1298
        %v1370 = vunpack.c.l.b16 %v1299
        %v1371 = vunpack.c.l.b16 %v1300
        %v1372 = vunpack.c.l.b16 %v1301
        %v1373 = vunpack.c.l.b16 %v1302
        %v1374 = vunpack.c.l.b16 %v1303
        %v1375 = vunpack.c.l.b16 %v1304
        %v1376 = vunpack.c.l.b16 %v1305
        %v1377 = vunpack.c.l.b16 %v1306
        %v1378 = vunpack.c.l.b16 %v1307
        %v1379 = vunpack.c.l.b16 %v1308
        %v1380 = vunpack.c.l.b16 %v1309
        %v1381 = vunpack.c.l.b16 %v1310
        %v1382 = vunpack.c.l.b16 %v1311
        %v1383 = vunpack.c.l.b16 %v1312
        %v1384 = vunpack.c.l.b16 %v1313
        %v1385 = vunpack.c.l.b16 %v1314
        %v1386 = vunpack.c.l.b16 %v1315
        %v1387 = vpack.c.b16 %v1356, %v1355
        %v1388 = vpack.c.b16 %v1358, %v1357
        %v1389 = vpack.c.b16 %v1360, %v1359
        %v1390 = vpack.c.b16 %v1362, %v1361
        %v1391 = vpack.c.b16 %v1364, %v1363
        %v1392 = vpack.c.b16 %v1366, %v1365
        %v1393 = vpack.c.b16 %v1368, %v1367
        %v1394 = vpack.c.b16 %v1370, %v1369
        %v1395 = vpack.c.b16 %v1372, %v1371
        %v1396 = vpack.c.b16 %v1374, %v1373
        %v1397 = vpack.c.b16 %v1376, %v1375
        %v1398 = vpack.c.b16 %v1378, %v1377
        %v1399 = vpack.c.b16 %v1380, %v1379
        %v1400 = vpack.c.b16 %v1382, %v1381
        %v1401 = vpack.c.b16 %v1384, %v1383
        %v1402 = vpack.c.b16 %v1386, %v1385
        %1419 = vmatprep.subr.bf16.mxu0 0
        %1420 = vmatpush1.bf16.msra.mxu0 %v1387
        %1421 = vmatprep.subr.bf16.mxu0 0
        %1422 = vmatpush1.bf16.msra.mxu0 %v1388
        %1423 = vmatprep.subr.bf16.mxu0 0
        %1424 = vmatpush1.bf16.msra.mxu0 %v1389
        %1425 = vmatprep.subr.bf16.mxu0 0
        %1426 = vmatpush1.bf16.msra.mxu0 %v1390
        %1427 = vmatprep.subr.bf16.mxu0 0
        %1428 = vmatpush1.bf16.msra.mxu0 %v1391
        %1429 = vmatprep.subr.bf16.mxu0 0
        %1430 = vmatpush1.bf16.msra.mxu0 %v1392
        %1431 = vmatprep.subr.bf16.mxu0 0
        %1432 = vmatpush1.bf16.msra.mxu0 %v1393
        %1433 = vmatprep.subr.bf16.mxu0 0
        %1434 = vmatpush1.bf16.msra.mxu0 %v1394
        %1435 = vmatprep.subr.bf16.mxu0 0
        %1436 = vmatpush1.bf16.msra.mxu0 %v1395
        %1437 = vmatprep.subr.bf16.mxu0 0
        %1438 = vmatpush1.bf16.msra.mxu0 %v1396
        %1439 = vmatprep.subr.bf16.mxu0 0
        %1440 = vmatpush1.bf16.msra.mxu0 %v1397
        %1441 = vmatprep.subr.bf16.mxu0 0
        %1442 = vmatpush1.bf16.msra.mxu0 %v1398
        %1443 = vmatprep.subr.bf16.mxu0 0
        %1444 = vmatpush1.bf16.msra.mxu0 %v1399
        %1445 = vmatprep.subr.bf16.mxu0 0
        %1446 = vmatpush1.bf16.msra.mxu0 %v1400
        %1447 = vmatprep.subr.bf16.mxu0 0
        %1448 = vmatpush1.bf16.msra.mxu0 %v1401
        %1449 = vmatprep.subr.bf16.mxu0 0
        %1450 = vmatpush1.bf16.msra.mxu0 %v1402
        %1451 = vmatprep.mubr.bf16.mxu0 %v1241
        %1452 = vmatmul.mubr.bf16.gmra.mrb[0].mxu0 %v1283
        %v1453 = vpop.f32.mrb[0].mxu0
        %v1454 = vadd.f32 %v1321, %v1453
        %v1455 = vpop.f32.mrb[0].mxu0
        %v1456 = vpop.f32.mrb[0].mxu0
        %v1457 = vadd.f32 %v1321, %v1456
        %v1458 = vpop.f32.mrb[0].mxu0
        %1459 = vdwg.mxu0
        %v1460 = vmax.f32 %v1454, 0.0
        %v1461 = vmax.f32 %v1457, 0.0
        %v1462 = vld [vmem:[%s10] sm:$0x1]
        %v1464 = vlaneseq
        %v1465 = vshrl.u32 %v1464, 7
        %v1466 = vsub.s32 0, %v1465
        %v1467 = vrot.slane %v1462, %v1466
        %v1469 = vmul.f32 %v1460, %v1467
        %v1470 = vmul.f32 %v1461, %v1467
        %1471 = vadd.xlane.f32.xlu0 %v1469
        %v1472 = vpop.xlane.xlu0 %1471
        %1473 = vadd.xlane.f32.xlu0 %v1470
        %v1474 = vpop.xlane.xlu0 %1473
        %v1475 = vtanh.pop %v1472
        %v1476 = vtanh.pop %v1474
        %v1477 = vadd.f32 %v1475, %v1220
        %v1478 = vadd.f32 %v1476, %v1221
        %1479 = vxpose.xlu0.b32.start [1/16] %v1477, 128
        %1480 = vxpose.xlu0.b32.cont [2/16] %v1478, 128
        %1481 = vxpose.xlu0.b32.cont [3/16] 0.0, 128
        %1482 = vxpose.xlu0.b32.cont [4/16] 0.0, 128
        %1483 = vxpose.xlu0.b32.cont [5/16] 0.0, 128
        %1484 = vxpose.xlu0.b32.cont [6/16] 0.0, 128
        %1485 = vxpose.xlu0.b32.cont [7/16] 0.0, 128
        %1486 = vxpose.xlu0.b32.cont [8/16] 0.0, 128
        %1487 = vxpose.xlu0.b32.cont [9/16] 0.0, 128
        %1488 = vxpose.xlu0.b32.cont [10/16] 0.0, 128
        %1489 = vxpose.xlu0.b32.cont [11/16] 0.0, 128
        %1490 = vxpose.xlu0.b32.cont [12/16] 0.0, 128
        %1491 = vxpose.xlu0.b32.cont [13/16] 0.0, 128
        %1492 = vxpose.xlu0.b32.cont [14/16] 0.0, 128
        %1493 = vxpose.xlu0.b32.cont [15/16] 0.0, 128
        %1494 = vxpose.xlu0.b32.end [16/16] 0.0, 128
        %v1495 = vpop.trf.xlu0
        %v1496 = vpop.trf.xlu0
        %v1497 = vpop.trf.xlu0
        %v1498 = vpop.trf.xlu0
        %v1499 = vpop.trf.xlu0
        %v1500 = vpop.trf.xlu0
        %v1501 = vpop.trf.xlu0
        %v1502 = vpop.trf.xlu0
        %v1503 = vpop.trf.xlu0
        %v1504 = vpop.trf.xlu0
        %v1505 = vpop.trf.xlu0
        %v1506 = vpop.trf.xlu0
        %v1507 = vpop.trf.xlu0
        %v1508 = vpop.trf.xlu0
        %v1509 = vpop.trf.xlu0
        %v1510 = vpop.trf.xlu0
        %vm1511 = vcmp.gt.f32.partialorder %v1495, %v1477
        %vm1512 = vcmp.gt.f32.partialorder %v1496, %v1478
        %v1513 = vsel %vm1511, 1, 0
        %v1514 = vsel %vm1512, 1, 0
        %v1515 = vcvt.s32.f32 %v1513
        %v1516 = vcvt.s32.f32 %v1514
        %vm1517 = vcmp.eq.f32.partialorder %v1495, %v1477
        %vm1518 = vcmp.eq.f32.partialorder %v1496, %v1478
        %v1519 = vsel %vm1517, 1, 0
        %v1520 = vsel %vm1518, 1, 0
        %v1521 = vcvt.s32.f32 %v1519
        %v1522 = vcvt.s32.f32 %v1520
        %v1523 = vmul.f32 %v1521, %v580
        %v1524 = vmul.f32 %v1522, %v581
        %v1525 = vadd.f32 %v1515, %v1523
        %v1526 = vadd.f32 %v1516, %v1524
        %v1527 = vsel %vm588, %v1525, 0.0
        %1528 = vadd.xlane.f32.xlu0 %v1527
        %v1529 = vpop.xlane.xlu0 %1528
        %v1530 = vsel %vm588, %v1526, 0.0
        %1531 = vadd.xlane.f32.xlu0 %v1530
        %v1532 = vpop.xlane.xlu0 %1531
        %vm1533 = vcmp.lt.f32.partialorder %v1529, 9.0
        %vm1534 = vcmp.lt.f32.partialorder %v1532, 9.0
        %v1535 = vsel %vm1533, 1, 0
        %v1536 = vsel %vm1534, 1, 0
        %v1537 = vcvt.s32.f32 %v1535
        %v1538 = vcvt.s32.f32 %v1536
        %v1539 = vmul.f32 %v1537, %v1212
        %v1540 = vmul.f32 %v1538, %v1213
        %v1541 = vmul.f32 %v1460, %v1475
        %v1542 = vmul.f32 %v1461, %v1476
        %v1543 = vmul.f32 %v1541, %v1539
        %v1544 = vmul.f32 %v1542, %v1540
        %v1545 = vsub.f32 1.0, %v1539
        %v1546 = vsub.f32 1.0, %v1540
        %v1547 = vmul.f32 %v1545, -1e+30
        %v1548 = vmul.f32 %v1546, -1e+30
        %v1549 = vadd.f32 %v1543, %v1547
        %v1550 = vadd.f32 %v1544, %v1548
        %v1551 = vmax.f32 %v1549, %v1550
        %v1552 = vrot.slane %v1551, 4
        %v1553 = vmax.f32 %v1551, %v1552
        %v1554 = vrot.slane %v1553, 2
        %v1555 = vmax.f32 %v1553, %v1554
        %v1556 = vrot.slane %v1555, 1
        %v1557 = vmax.f32 %v1555, %v1556
        %v1558 = vadd.f32 %v1231, %v1557
        %v1559 = vadd.f32 %v1543, %v1544
        %v1560 = vrot.slane %v1559, 4
        %v1561 = vadd.f32 %v1559, %v1560
        %v1562 = vrot.slane %v1561, 2
        %v1563 = vadd.f32 %v1561, %v1562
        %v1564 = vrot.slane %v1563, 1
        %v1565 = vadd.f32 %v1563, %v1564
        %v1566 = vmul.f32 %v1565, 0.11111111
        %v1567 = vadd.f32 %v1240, %v1566
        %v1568 = vpack.c.bf16 %v1558, %v1558
        %v1569 = vpack.c.bf16 %v1567, %v1567
        %v1570 = vld [vmem:[%s11] sm:$0xf]
        %v1571 = vld [vmem:[%s11 + $0x4] sm:$0xf]
        %v1572 = vld [vmem:[%s11 + $0x8] sm:$0xf]
        %v1573 = vld [vmem:[%s11 + $0xc] sm:$0xf]
        %v1574 = vld [vmem:[%s11 + $0x10] sm:$0xf]
        %v1575 = vld [vmem:[%s11 + $0x14] sm:$0xf]
        %v1576 = vld [vmem:[%s11 + $0x18] sm:$0xf]
        %v1577 = vld [vmem:[%s11 + $0x1c] sm:$0xf]
        %v1578 = vld [vmem:[%s11 + $0x20] sm:$0xf]
        %v1579 = vld [vmem:[%s11 + $0x24] sm:$0xf]
        %v1580 = vld [vmem:[%s11 + $0x28] sm:$0xf]
        %v1581 = vld [vmem:[%s11 + $0x2c] sm:$0xf]
        %v1582 = vld [vmem:[%s11 + $0x30] sm:$0xf]
        %v1583 = vld [vmem:[%s11 + $0x34] sm:$0xf]
        %v1584 = vld [vmem:[%s11 + $0x38] sm:$0xf]
        %v1585 = vld [vmem:[%s11 + $0x3c] sm:$0xf]
        %v1586 = vld [vmem:[%s11 + $0x40] sm:$0xf]
        %v1587 = vld [vmem:[%s11 + $0x44] sm:$0xf]
        %v1588 = vld [vmem:[%s11 + $0x48] sm:$0xf]
        %v1589 = vld [vmem:[%s11 + $0x4c] sm:$0xf]
        %v1590 = vld [vmem:[%s11 + $0x50] sm:$0xf]
        %v1591 = vld [vmem:[%s11 + $0x54] sm:$0xf]
        %v1592 = vld [vmem:[%s11 + $0x58] sm:$0xf]
        %v1593 = vld [vmem:[%s11 + $0x5c] sm:$0xf]
        %v1594 = vld [vmem:[%s11 + $0x60] sm:$0xf]
        %v1595 = vld [vmem:[%s11 + $0x64] sm:$0xf]
        %v1596 = vld [vmem:[%s11 + $0x68] sm:$0xf]
        %v1597 = vld [vmem:[%s11 + $0x6c] sm:$0xf]
        %v1598 = vld [vmem:[%s11 + $0x70] sm:$0xf]
        %v1599 = vld [vmem:[%s11 + $0x74] sm:$0xf]
        %v1600 = vld [vmem:[%s11 + $0x78] sm:$0xf]
        %v1601 = vld [vmem:[%s11 + $0x7c] sm:$0xf]
        %v1602 = vld [vmem:[%s12] sm:$0x1]
        %v1635 = vunpack.c.l.b16 %v1570
        %v1636 = vunpack.c.l.b16 %v1571
        %v1637 = vunpack.c.l.b16 %v1572
        %v1638 = vunpack.c.l.b16 %v1573
        %v1639 = vunpack.c.l.b16 %v1574
        %v1640 = vunpack.c.l.b16 %v1575
        %v1641 = vunpack.c.l.b16 %v1576
        %v1642 = vunpack.c.l.b16 %v1577
        %v1643 = vunpack.c.l.b16 %v1578
        %v1644 = vunpack.c.l.b16 %v1579
        %v1645 = vunpack.c.l.b16 %v1580
        %v1646 = vunpack.c.l.b16 %v1581
        %v1647 = vunpack.c.l.b16 %v1582
        %v1648 = vunpack.c.l.b16 %v1583
        %v1649 = vunpack.c.l.b16 %v1584
        %v1650 = vunpack.c.l.b16 %v1585
        %v1651 = vunpack.c.l.b16 %v1586
        %v1652 = vunpack.c.l.b16 %v1587
        %v1653 = vunpack.c.l.b16 %v1588
        %v1654 = vunpack.c.l.b16 %v1589
        %v1655 = vunpack.c.l.b16 %v1590
        %v1656 = vunpack.c.l.b16 %v1591
        %v1657 = vunpack.c.l.b16 %v1592
        %v1658 = vunpack.c.l.b16 %v1593
        %v1659 = vunpack.c.l.b16 %v1594
        %v1660 = vunpack.c.l.b16 %v1595
        %v1661 = vunpack.c.l.b16 %v1596
        %v1662 = vunpack.c.l.b16 %v1597
        %v1663 = vunpack.c.l.b16 %v1598
        %v1664 = vunpack.c.l.b16 %v1599
        %v1665 = vunpack.c.l.b16 %v1600
        %v1666 = vunpack.c.l.b16 %v1601
        %v1667 = vpack.c.b16 %v1636, %v1635
        %v1668 = vpack.c.b16 %v1638, %v1637
        %v1669 = vpack.c.b16 %v1640, %v1639
        %v1670 = vpack.c.b16 %v1642, %v1641
        %v1671 = vpack.c.b16 %v1644, %v1643
        %v1672 = vpack.c.b16 %v1646, %v1645
        %v1673 = vpack.c.b16 %v1648, %v1647
        %v1674 = vpack.c.b16 %v1650, %v1649
        %v1675 = vpack.c.b16 %v1652, %v1651
        %v1676 = vpack.c.b16 %v1654, %v1653
        %v1677 = vpack.c.b16 %v1656, %v1655
        %v1678 = vpack.c.b16 %v1658, %v1657
        %v1679 = vpack.c.b16 %v1660, %v1659
        %v1680 = vpack.c.b16 %v1662, %v1661
        %v1681 = vpack.c.b16 %v1664, %v1663
        %v1682 = vpack.c.b16 %v1666, %v1665
        %1699 = vmatprep.subr.bf16.mxu0 0
        %1700 = vmatpush1.bf16.msra.mxu0 %v1667
        %1701 = vmatprep.subr.bf16.mxu0 0
        %1702 = vmatpush1.bf16.msra.mxu0 %v1668
        %1703 = vmatprep.subr.bf16.mxu0 0
        %1704 = vmatpush1.bf16.msra.mxu0 %v1669
        %1705 = vmatprep.subr.bf16.mxu0 0
        %1706 = vmatpush1.bf16.msra.mxu0 %v1670
        %1707 = vmatprep.subr.bf16.mxu0 0
        %1708 = vmatpush1.bf16.msra.mxu0 %v1671
        %1709 = vmatprep.subr.bf16.mxu0 0
        %1710 = vmatpush1.bf16.msra.mxu0 %v1672
        %1711 = vmatprep.subr.bf16.mxu0 0
        %1712 = vmatpush1.bf16.msra.mxu0 %v1673
        %1713 = vmatprep.subr.bf16.mxu0 0
        %1714 = vmatpush1.bf16.msra.mxu0 %v1674
        %1715 = vmatprep.subr.bf16.mxu0 0
        %1716 = vmatpush1.bf16.msra.mxu0 %v1675
        %1717 = vmatprep.subr.bf16.mxu0 0
        %1718 = vmatpush1.bf16.msra.mxu0 %v1676
        %1719 = vmatprep.subr.bf16.mxu0 0
        %1720 = vmatpush1.bf16.msra.mxu0 %v1677
        %1721 = vmatprep.subr.bf16.mxu0 0
        %1722 = vmatpush1.bf16.msra.mxu0 %v1678
        %1723 = vmatprep.subr.bf16.mxu0 0
        %1724 = vmatpush1.bf16.msra.mxu0 %v1679
        %1725 = vmatprep.subr.bf16.mxu0 0
        %1726 = vmatpush1.bf16.msra.mxu0 %v1680
        %1727 = vmatprep.subr.bf16.mxu0 0
        %1728 = vmatpush1.bf16.msra.mxu0 %v1681
        %1729 = vmatprep.subr.bf16.mxu0 0
        %1730 = vmatpush1.bf16.msra.mxu0 %v1682
        %1731 = vmatprep.mubr.bf16.mxu0 %v1569
        %1732 = vmatmul.mubr.bf16.gmra.mrb[0].mxu0 %v1568
        %v1733 = vpop.f32.mrb[0].mxu0
        %v1734 = vadd.f32 %v1602, %v1733
        %v1735 = vpop.f32.mrb[0].mxu0
        %v1736 = vpop.f32.mrb[0].mxu0
        %v1737 = vpop.f32.mrb[0].mxu0
        %1738 = vdwg.mxu0
        %v1739 = vmax.f32 %v1734, 0.0
        %v1740 = vpack.c.bf16 %v1739, %v1739
        %v1741 = vld [vmem:[%s13] sm:$0xf]
        %v1742 = vld [vmem:[%s13 + $0x4] sm:$0xf]
        %v1743 = vld [vmem:[%s13 + $0x8] sm:$0xf]
        %v1744 = vld [vmem:[%s13 + $0xc] sm:$0xf]
        %v1745 = vld [vmem:[%s13 + $0x10] sm:$0xf]
        %v1746 = vld [vmem:[%s13 + $0x14] sm:$0xf]
        %v1747 = vld [vmem:[%s13 + $0x18] sm:$0xf]
        %v1748 = vld [vmem:[%s13 + $0x1c] sm:$0xf]
        %v1749 = vld [vmem:[%s14] sm:$0x1]
        %v1758 = vunpack.c.l.b16 %v1741
        %v1759 = vunpack.c.l.b16 %v1742
        %v1760 = vunpack.c.l.b16 %v1743
        %v1761 = vunpack.c.l.b16 %v1744
        %v1762 = vunpack.c.l.b16 %v1745
        %v1763 = vunpack.c.l.b16 %v1746
        %v1764 = vunpack.c.l.b16 %v1747
        %v1765 = vunpack.c.l.b16 %v1748
        %v1766 = vpack.c.b16 %v1759, %v1758
        %v1767 = vpack.c.b16 %v1761, %v1760
        %v1768 = vpack.c.b16 %v1763, %v1762
        %v1769 = vpack.c.b16 %v1765, %v1764
        %vm1774 = vcmask 523264
        %v1776 = vsel %vm1774, %v1740, 0
        %1778 = vmatprep.subr.bf16.mxu0 0
        %1779 = vmatpush1.bf16.msra.mxu0 %v1766
        %1780 = vmatprep.subr.bf16.mxu0 0
        %1781 = vmatpush1.bf16.msra.mxu0 %v1767
        %1782 = vmatprep.subr.bf16.mxu0 0
        %1783 = vmatpush1.bf16.msra.mxu0 %v1768
        %1784 = vmatprep.subr.bf16.mxu0 0
        %1785 = vmatpush1.bf16.msra.mxu0 %v1769
        %1786 = vmatprep.subr.bf16.mxu0 0
        %1787 = vmatpush1.bf16.msra.mxu0 0
        %1788 = vmatprep.subr.bf16.mxu0 0
        %1789 = vmatpush1.bf16.msra.mxu0 0
        %1790 = vmatprep.subr.bf16.mxu0 0
        %1791 = vmatpush1.bf16.msra.mxu0 0
        %1792 = vmatprep.subr.bf16.mxu0 0
        %1793 = vmatpush1.bf16.msra.mxu0 0
        %1794 = vmatprep.subr.bf16.mxu0 0
        %1795 = vmatpush1.bf16.msra.mxu0 0
        %1796 = vmatprep.subr.bf16.mxu0 0
        %1797 = vmatpush1.bf16.msra.mxu0 0
        %1798 = vmatprep.subr.bf16.mxu0 0
        %1799 = vmatpush1.bf16.msra.mxu0 0
        %1800 = vmatprep.subr.bf16.mxu0 0
        %1801 = vmatpush1.bf16.msra.mxu0 0
        %1802 = vmatprep.subr.bf16.mxu0 0
        %1803 = vmatpush1.bf16.msra.mxu0 0
        %1804 = vmatprep.subr.bf16.mxu0 0
        %1805 = vmatpush1.bf16.msra.mxu0 0
        %1806 = vmatprep.subr.bf16.mxu0 0
        %1807 = vmatpush1.bf16.msra.mxu0 0
        %1808 = vmatprep.subr.bf16.mxu0 0
        %1809 = vmatpush1.bf16.msra.mxu0 0
        %1810 = vmatprep.mubr.bf16.mxu0 0
        %1811 = vmatmul.mubr.bf16.gmra.mrb[0].mxu0 %v1776
        %v1812 = vpop.f32.mrb[0].mxu0
        %v1813 = vadd.f32 %v1749, %v1812
        %v1814 = vpop.f32.mrb[0].mxu0
        %v1815 = vpop.f32.mrb[0].mxu0
        %v1816 = vpop.f32.mrb[0].mxu0
        %1817 = vdwg.mxu0
        %v1818 = vmax.f32 %v1813, 0.0
        %v1819 = vpack.c.bf16 %v1818, %v1818
        %v1820 = vld [vmem:[%s15] sm:$0xf]
        %v1821 = vld [vmem:[%s15 + $0x4] sm:$0xf]
        %v1822 = vld [vmem:[%s15 + $0x8] sm:$0xf]
        %v1823 = vld [vmem:[%s15 + $0xc] sm:$0xf]
        %v1824 = vld [vmem:[%s16] sm:$0x1]
        %v1829 = vunpack.c.l.b16 %v1820
        %v1830 = vunpack.c.l.b16 %v1821
        %v1831 = vunpack.c.l.b16 %v1822
        %v1832 = vunpack.c.l.b16 %v1823
        %v1833 = vpack.c.b16 %v1830, %v1829
        %v1834 = vpack.c.b16 %v1832, %v1831
        %vm1837 = vcmask 261120
        %v1839 = vsel %vm1837, %v1819, 0
        %1841 = vmatprep.subr.bf16.mxu0 0
        %1842 = vmatpush1.bf16.msra.mxu0 %v1833
        %1843 = vmatprep.subr.bf16.mxu0 0
        %1844 = vmatpush1.bf16.msra.mxu0 %v1834
        %1845 = vmatprep.subr.bf16.mxu0 0
        %1846 = vmatpush1.bf16.msra.mxu0 0
        %1847 = vmatprep.subr.bf16.mxu0 0
        %1848 = vmatpush1.bf16.msra.mxu0 0
        %1849 = vmatprep.subr.bf16.mxu0 0
        %1850 = vmatpush1.bf16.msra.mxu0 0
        %1851 = vmatprep.subr.bf16.mxu0 0
        %1852 = vmatpush1.bf16.msra.mxu0 0
        %1853 = vmatprep.subr.bf16.mxu0 0
        %1854 = vmatpush1.bf16.msra.mxu0 0
        %1855 = vmatprep.subr.bf16.mxu0 0
        %1856 = vmatpush1.bf16.msra.mxu0 0
        %1857 = vmatprep.subr.bf16.mxu0 0
        %1858 = vmatpush1.bf16.msra.mxu0 0
        %1859 = vmatprep.subr.bf16.mxu0 0
        %1860 = vmatpush1.bf16.msra.mxu0 0
        %1861 = vmatprep.subr.bf16.mxu0 0
        %1862 = vmatpush1.bf16.msra.mxu0 0
        %1863 = vmatprep.subr.bf16.mxu0 0
        %1864 = vmatpush1.bf16.msra.mxu0 0
        %1865 = vmatprep.subr.bf16.mxu0 0
        %1866 = vmatpush1.bf16.msra.mxu0 0
        %1867 = vmatprep.subr.bf16.mxu0 0
        %1868 = vmatpush1.bf16.msra.mxu0 0
        %1869 = vmatprep.subr.bf16.mxu0 0
        %1870 = vmatpush1.bf16.msra.mxu0 0
        %1871 = vmatprep.subr.bf16.mxu0 0
        %1872 = vmatpush1.bf16.msra.mxu0 0
        %1873 = vmatprep.mubr.bf16.mxu0 0
        %1874 = vmatmul.mubr.bf16.gmra.mrb[0].mxu0 %v1839
        %v1875 = vpop.f32.mrb[0].mxu0
        %v1876 = vadd.f32 %v1824, %v1875
        %v1877 = vpop.f32.mrb[0].mxu0
        %v1878 = vpop.f32.mrb[0].mxu0
        %v1879 = vpop.f32.mrb[0].mxu0
        %1880 = vdwg.mxu0
        %vm1881 = vcmask 57344
        %v1882 = vsel %vm1881, %v1876, -inf
        %1883 = vmax.xlane.f32.xlu0 %v1882
        %v1884 = vpop.xlane.xlu0 %1883
        %v1885 = vsub.f32 %v1876, %v1884
        %v1886 = vmul.f32 %v1885, 1.442695
        %v1887 = vpow.pop %v1886
        %v1888 = vsel %vm1881, %v1887, 0.0
        %1889 = vadd.xlane.f32.xlu0 %v1888
        %v1890 = vpop.xlane.xlu0 %1889
        %v1891 = vlog2.pop %v1890
        %v1892 = vmul.f32 %v1891, 0.6931472
        %v1893 = vadd.f32 %v1884, %v1892
        %v1894 = vsub.f32 %v1876, %v1893
        %1895 = vst.msk [vmem:[%s555] sm:$0x1] %vm1881, %v1894
        %s1896 = sand.u32 %s406, 1
        %s1897 = scalar_lea.sflag [#allocation3], %s1896
        %s1898 = sand.u32 %s406, 1
        %s1899 = scalar_lea.vmem [#allocation2], %s1898
        // Predicated region
        $region89: #{topk_pool_net_forward.1} parent=87 // pred_check
          %p1900 = pneg %p416
        $region90: #{topk_pool_net_forward.1} parent=87 // pred_check_branch
          %1902 = sbr.rel (%p1900) target = $region92
        $region91: #{topk_pool_net_forward.1} parent=87 // pred_region
          %s1904 = ssub.s32 16, 16
          %1905 = vsyncadd %s1897, %s1904
          %s1906 = smul.addr %s31, 16
          %s1907 = scalar_lea.hbm %s17, %s1906
          %s1909 = sshll.u32 %s1899, 4
          %s1910 = int_to_ptr.vmem [resolvable:$true] %s1909
          %1912 = dma.vmem_to_hbm [thread:$0]  %s1910, 16, %s1907, %s1897
        $region92: #{topk_pool_net_forward.1} parent=87 // pred_fallthru
          _
      $region88: #{topk_pool_net_forward.1} parent=5 // pred_fallthru
        _
      %p1913 = scmp.le.s32.totalorder 2, %s26
      // Predicated region
      $region93: #{topk_pool_net_forward.1} parent=5 // pred_check
        %p1914 = pneg %p1913
      $region94: #{topk_pool_net_forward.1} parent=5 // pred_check_branch
        %1916 = sbr.rel (%p1914) target = $region96
      $region95: #{topk_pool_net_forward.1} parent=5 // pred_region
        %s1917 = ssub.s32 %s26, 2
        // Predicated region
        $region97: #{topk_pool_net_forward.1} parent=95 // pred_check
          %p1918 = pneg %p422
        $region98: #{topk_pool_net_forward.1} parent=95 // pred_check_branch
          %1920 = sbr.rel (%p1918) target = $region100
        $region99: #{topk_pool_net_forward.1} parent=95 // pred_region
          %s1921 = sand.u32 %s407, 1
          %s1922 = scalar_lea.sflag [#allocation3], %s1921
          %s1923 = sand.u32 %s407, 1
          %s1924 = scalar_lea.vmem [#allocation2], %s1923
          %1925 = dma.done %s1922, 16
        $region100: #{topk_pool_net_forward.1} parent=95 // pred_fallthru
          _
      $region96: #{topk_pool_net_forward.1} parent=5 // pred_fallthru
        _
    $region6: #{topk_pool_net_forward.1} parent=1 // loop_footer
      %s30 = sadd.s32 1, %s26
    $region7: #{topk_pool_net_forward.1} parent=1 // loop_footer_branch
      %25 = sbr.rel target = $region3
    $region8: #{topk_pool_net_forward.1} parent=1 // loop_exit
      _
    %1926 = vsyncpa [#allocation3], 1
    %s1927 = scalar_lea.sflag [#allocation3], 1
    %1928 = vsyncpa %s1927, 1

</llo_original>
